<compile_context>
chip_gen: v6e
topology: v6e:2x2x1
jax: 0.10.0
libtpu: 0.0.40
codegen_flags: <defaults>
</compile_context>

<pallas_src>
import functools

import jax
import jax.numpy as jnp
from jax.experimental import pallas as pl
from jax.experimental.pallas import tpu as pltpu

LANES = 128
ROW_PAD = 512          # node axis padded to a multiple of this


def _round_up(n, m):
    return ((n + m - 1) // m) * m


# -----------------------------------------------------------------------------
# Pallas kernels
# -----------------------------------------------------------------------------
def _xw_kernel(x_ref, w_ref, dinv_ref, o_ref):
    """XW_scaled = dinv * (X @ W); bf16 MXU matmul, f32 accumulate, bf16 out."""
    x = x_ref[...].astype(jnp.bfloat16)
    xw = jnp.dot(x, w_ref[...], preferred_element_type=jnp.float32)
    o_ref[...] = (xw * dinv_ref[...]).astype(o_ref.dtype)


def _spmm_bn_kernel(a_ref, xw_ref, dinv_ref, valid_ref, b_ref, slope_ref,
                    z_ref, sum_ref, sq_ref, *, tk):
    """z = valid * PReLU(dinv * (A @ XW) + b), accumulated over K tiles directly
    in the resident f32 output block; per-row-tile BN partial stats emitted in
    the epilogue (sum / sumsq over the tile's rows)."""
    k = pl.program_id(1)

    @pl.when(k == 0)
    def _():
        z_ref[...] = jnp.zeros_like(z_ref)

    start = pl.multiple_of(k * tk, tk)
    a = a_ref[...].astype(jnp.bfloat16)            # int8 0/1 -> bf16 (exact)
    z_ref[...] += jnp.dot(a, xw_ref[pl.ds(start, tk), :],
                          preferred_element_type=jnp.float32)

    @pl.when(k == pl.num_programs(1) - 1)
    def _():
        h = z_ref[...] * dinv_ref[...] + b_ref[...]
        h = jnp.where(h >= 0.0, h, slope_ref[...] * h)
        h = h * valid_ref[...]                     # zero out padded rows
        z_ref[...] = h
        s = jnp.sum(h, axis=0, keepdims=True)
        q = jnp.sum(h * h, axis=0, keepdims=True)
        sum_ref[...] = s.reshape(sum_ref.shape)
        sq_ref[...] = q.reshape(sq_ref.shape)


def _bn_act_kernel(z_ref, scale_ref, shift_ref, slope_ref, valid_ref, o_ref,
                   *, do_l2norm):
    """BatchNorm (pre-folded scale/shift) -> PReLU -> optional row L2 norm."""
    h = z_ref[...] * scale_ref[...] + shift_ref[...]
    h = jnp.where(h >= 0.0, h, slope_ref[...] * h)
    if do_l2norm:  # F.normalize(h, p=2, dim=1)
        ss = jnp.sum(h * h, axis=-1, keepdims=True)
        h = h * jax.lax.rsqrt(jnp.maximum(ss, 1e-24))
    o_ref[...] = h * valid_ref[...]                # keep padded rows exactly 0


def _loss_kernel(h1_ref, feat_ref, valid_ref, h2i_ref, h2j_ref, mat_ref,
                 o1_ref, o2_ref, *, sce_alpha):
    """Per-row partials: o1 = (1-cos(h1,feat))^alpha (once per i tile);
    o2 = sum_j sum_cols (h2_i . h2_j^T - M)^2 accumulated over j tiles."""
    j = pl.program_id(1)

    @pl.when(j == 0)
    def _():
        x = h1_ref[...]
        y = feat_ref[...]
        xn = x * jax.lax.rsqrt(jnp.maximum(jnp.sum(x * x, -1, keepdims=True), 1e-24))
        yn = y * jax.lax.rsqrt(jnp.maximum(jnp.sum(y * y, -1, keepdims=True), 1e-24))
        cos = jnp.sum(xn * yn, axis=-1, keepdims=True)
        o1_ref[...] = (jnp.maximum(1.0 - cos, 0.0) ** sce_alpha) * valid_ref[...]
        o2_ref[...] = jnp.zeros_like(o2_ref)

    nm = jax.lax.dot_general(h2i_ref[...], h2j_ref[...],
                             dimension_numbers=(((1,), (1,)), ((), ())),
                             preferred_element_type=jnp.float32)
    d = nm - mat_ref[...]
    o2_ref[...] += jnp.sum(d * d, axis=1, keepdims=True)


# -----------------------------------------------------------------------------
# pallas_call wrappers
# -----------------------------------------------------------------------------
def gcn_layer(adj_i8, x_pad, dinv, valid, W, b, gamma, beta, a_conv, a_act,
              *, n_real, do_l2norm=False, tile_m=512):
    """GraphConv(+PReLU) -> BatchNorm -> PReLU [-> L2 row norm].

    adj_i8 : (Np, Np) int8 0/1 adjacency (padded, self loops included).
    x_pad  : (Np, Fin_pad) f32 node features (post-dropout).
    dinv   : (Np, 1) f32 D^{-1/2} (ones for norm='none').
    valid  : (Np, 1) f32 row-valid mask (1 for real nodes, 0 for padding).
    """
    Np, fin_p = x_pad.shape
    fout_p = W.shape[1]
    f32 = jnp.float32

    tm = min(tile_m, Np)
    tk = 1024 if (Np % 1024 == 0 and Np >= 1024) else 512
    tk = min(tk, Np)
    n_m, n_k = Np // tm, Np // tk

    dinv = dinv.reshape(Np, 1).astype(f32)
    valid = valid.reshape(Np, 1).astype(f32)
    b2 = b.reshape(1, fout_p).astype(f32)
    a1 = jnp.broadcast_to(a_conv.reshape(1, 1).astype(f32), (1, fout_p))
    a2 = jnp.broadcast_to(a_act.reshape(1, 1).astype(f32), (1, fout_p))

    # (1) XW_scaled = dinv * (X @ W), bf16 out, hoisted out of the A reduction.
    xw = pl.pallas_call(
        _xw_kernel,
        grid=(n_m,),
        in_specs=[
            pl.BlockSpec((tm, fin_p), lambda i: (i, 0)),
            pl.BlockSpec((fin_p, fout_p), lambda i: (0, 0)),
            pl.BlockSpec((tm, 1), lambda i: (i, 0)),
        ],
        out_specs=pl.BlockSpec((tm, fout_p), lambda i: (i, 0)),
        out_shape=jax.ShapeDtypeStruct((Np, fout_p), jnp.bfloat16),
        compiler_params=pltpu.CompilerParams(dimension_semantics=("parallel",)),
    )(x_pad.astype(f32), W.astype(jnp.bfloat16), dinv)

    # (2) SpMM with resident XW, int8 A tiles, fused BN partial statistics.
    z, psum, psq = pl.pallas_call(
        functools.partial(_spmm_bn_kernel, tk=tk),
        grid=(n_m, n_k),
        in_specs=[
            pl.BlockSpec((tm, tk), lambda i, k: (i, k)),        # A tile (int8)
            pl.BlockSpec((Np, fout_p), lambda i, k: (0, 0)),    # XW resident (bf16)
            pl.BlockSpec((tm, 1), lambda i, k: (i, 0)),         # D^{-1/2} rows
            pl.BlockSpec((tm, 1), lambda i, k: (i, 0)),         # row-valid mask
            pl.BlockSpec((1, fout_p), lambda i, k: (0, 0)),     # bias
            pl.BlockSpec((1, fout_p), lambda i, k: (0, 0)),     # PReLU slope (conv)
        ],
        out_specs=(
            pl.BlockSpec((tm, fout_p), lambda i, k: (i, 0)),
            pl.BlockSpec((1, 1, fout_p), lambda i, k: (i, 0, 0)),
            pl.BlockSpec((1, 1, fout_p), lambda i, k: (i, 0, 0)),
        ),
        out_shape=(
            jax.ShapeDtypeStruct((Np, fout_p), f32),
            jax.ShapeDtypeStruct((n_m, 1, fout_p), f32),
            jax.ShapeDtypeStruct((n_m, 1, fout_p), f32),
        ),
        compiler_params=pltpu.CompilerParams(
            dimension_semantics=("parallel", "arbitrary"),
            vmem_limit_bytes=32 * 1024 * 1024),
    )(adj_i8, xw, dinv, valid, b2, a1)

    # (3) finish BN stats (tiny (n_m, F) reduction) in plain JAX.
    s = jnp.sum(psum[:, 0, :], axis=0)
    q = jnp.sum(psq[:, 0, :], axis=0)
    mean = s / n_real
    var = q / n_real - mean * mean                 # biased batch variance (training)
    rstd = jax.lax.rsqrt(var + 1e-5)
    scale = (gamma * rstd).reshape(1, fout_p).astype(f32)
    shift = (beta - mean * gamma * rstd).reshape(1, fout_p).astype(f32)

    # (4) BN-apply + outer PReLU (+ L2 row norm), row-tiled, lane-dense output.
    h = pl.pallas_call(
        functools.partial(_bn_act_kernel, do_l2norm=do_l2norm),
        grid=(n_m,),
        in_specs=[
            pl.BlockSpec((tm, fout_p), lambda i: (i, 0)),
            pl.BlockSpec((1, fout_p), lambda i: (0, 0)),
            pl.BlockSpec((1, fout_p), lambda i: (0, 0)),
            pl.BlockSpec((1, fout_p), lambda i: (0, 0)),
            pl.BlockSpec((tm, 1), lambda i: (i, 0)),
        ],
        out_specs=pl.BlockSpec((tm, fout_p), lambda i: (i, 0)),
        out_shape=jax.ShapeDtypeStruct((Np, fout_p), f32),
        compiler_params=pltpu.CompilerParams(dimension_semantics=("parallel",)),
    )(z, scale, shift, a2, valid)

    return h


def losses(h1, feat_pad, h2, matrix_pad, valid, *, n_real, sce_alpha, tile=512):
    """loss1 = sce_loss(h1, feat); loss2 = MSE(h2 @ h2.T, matrix).

    (i, j)-tiled, per-row partial outputs (i-parallel); final sums + 1/N, 1/N^2
    scaling in plain JAX.  h2 streamed in bf16 for the MXU."""
    Np, fp = h1.shape
    tl = min(tile, Np)
    n_t = Np // tl
    f32 = jnp.float32
    h2_bf = h2.astype(jnp.bfloat16)
    valid = valid.reshape(Np, 1).astype(f32)

    o1, o2 = pl.pallas_call(
        functools.partial(_loss_kernel, sce_alpha=sce_alpha),
        grid=(n_t, n_t),
        in_specs=[
            pl.BlockSpec((tl, fp), lambda i, j: (i, 0)),    # h1 rows (f32)
            pl.BlockSpec((tl, fp), lambda i, j: (i, 0)),    # feat rows (f32)
            pl.BlockSpec((tl, 1), lambda i, j: (i, 0)),     # row-valid mask
            pl.BlockSpec((tl, fp), lambda i, j: (i, 0)),    # h2 rows (bf16, i)
            pl.BlockSpec((tl, fp), lambda i, j: (j, 0)),    # h2 rows (bf16, j)
            pl.BlockSpec((tl, tl), lambda i, j: (i, j)),    # matrix tile (f32)
        ],
        out_specs=(pl.BlockSpec((tl, 1), lambda i, j: (i, 0)),
                   pl.BlockSpec((tl, 1), lambda i, j: (i, 0))),
        out_shape=(jax.ShapeDtypeStruct((Np, 1), f32),
                   jax.ShapeDtypeStruct((Np, 1), f32)),
        compiler_params=pltpu.CompilerParams(
            dimension_semantics=("parallel", "arbitrary"),
            vmem_limit_bytes=32 * 1024 * 1024),
    )(h1.astype(f32), feat_pad.astype(f32), valid, h2_bf, h2_bf,
      matrix_pad.astype(f32))

    loss1 = jnp.sum(o1) / n_real
    loss2 = jnp.sum(o2) / (n_real * n_real)
    return loss1, loss2


# -----------------------------------------------------------------------------
# Plain-JAX glue (randomness / graph surgery / parameter setup)
# -----------------------------------------------------------------------------
def dropout(key, x, p):
    if p <= 0.0:
        return x
    keep = jax.random.bernoulli(key, 1.0 - p, x.shape)
    return jnp.where(keep, x / (1.0 - p), 0.0)


def init_params(key, in_hidden, out_hidden):
    def xavier(k, shape):
        lim = (6.0 / (shape[0] + shape[1])) ** 0.5
        return jax.random.uniform(k, shape, jnp.float32, -lim, lim)

    ks = jax.random.split(key, 3)

    def block(k, fin, fout):
        return {
            "W": xavier(k, (fin, fout)),
            "b": jnp.zeros((fout,), jnp.float32),
            "gamma": jnp.ones((fout,), jnp.float32),
            "beta": jnp.zeros((fout,), jnp.float32),
            "a_conv": jnp.full((1,), 0.25, jnp.float32),   # PReLU inside GraphConv
            "a_act": jnp.full((1,), 0.25, jnp.float32),    # outer PReLU
        }

    return {
        "enc": block(ks[0], in_hidden, out_hidden),
        "dec1": block(ks[1], out_hidden, in_hidden),
        "dec2": block(ks[2], out_hidden, in_hidden),
        "enc_mask_token": jnp.zeros((1, in_hidden), jnp.float32),
    }


def _pad_block(blk, fin_p, fout_p):
    W = blk["W"]
    return {
        "W": jnp.pad(W, ((0, fin_p - W.shape[0]), (0, fout_p - W.shape[1]))),
        "b": jnp.pad(blk["b"], (0, fout_p - blk["b"].shape[0])),
        "gamma": jnp.pad(blk["gamma"], (0, fout_p - blk["gamma"].shape[0])),
        "beta": jnp.pad(blk["beta"], (0, fout_p - blk["beta"].shape[0])),
        "a_conv": blk["a_conv"],
        "a_act": blk["a_act"],
    }


def mg_forward(params, adj, feat, matrix, key, cfg):
    N, in_hidden = feat.shape
    out_hidden = params["enc"]["W"].shape[1]
    fin_p = _round_up(in_hidden, LANES)
    fmid_p = _round_up(out_hidden, LANES)
    Np = _round_up(N, ROW_PAD)
    pad_n = Np - N

    (k_perm, k_pmask, k_noise, k_edrop, k_eadd,
     k_dp1a, k_dp1b, k_dp2, k_dp3) = jax.random.split(key, 9)

    # ---- mask_node ------------------------------------------------------
    rate_node, noise_node = cfg["rate_node"], cfg["noise_node"]
    perm = jax.random.permutation(k_perm, N)
    num_mask = int(rate_node * N)
    mask_nodes = perm[:num_mask]
    num_noise = int(noise_node * num_mask)
    perm_mask = jax.random.permutation(k_pmask, num_mask)
    token_nodes = mask_nodes[perm_mask[:int((1.0 - noise_node) * num_mask)]]
    noise_nodes = mask_nodes[perm_mask[num_mask - num_noise:]]
    noise_to_be_chosen = jax.random.permutation(k_noise, N)[:num_noise]

    x = feat
    x = x.at[token_nodes].set(0.0)
    if noise_node > 0:
        x = x.at[noise_nodes].set(feat[noise_to_be_chosen])
    else:
        x = x.at[noise_nodes].set(0.0)
    x = x.at[token_nodes].add(params["enc_mask_token"][0])

    # ---- mask_edge (bool/int8 throughout; no dense f32 N x N temporaries) ----
    # TODO(synk): DGL DropEdge/AddEdge drop/add a fixed ratio of edge ids;
    # approximated here with per-entry Bernoulli masks on the dense adjacency.
    adj_b = adj > 0
    off_diag = ~jnp.eye(N, dtype=bool)
    a_b = adj_b & off_diag                                            # remove self loops
    a_b = a_b & jax.random.bernoulli(k_edrop, 1.0 - cfg["rate_edge"], (N, N))
    a_b = a_b | (jax.random.bernoulli(k_eadd, cfg["noise_edge"], (N, N)) & off_diag)
    new_b = a_b | (~off_diag)                                         # self loops back

    adj_i8 = jnp.pad(adj_b.astype(jnp.int8), ((0, pad_n), (0, pad_n)))
    new_i8 = jnp.pad(new_b.astype(jnp.int8), ((0, pad_n), (0, pad_n)))

    # GraphConv norm='both' folded into the kernels as D^{-1/2} row/col scaling.
    deg_adj = jnp.sum(adj_i8, axis=1, dtype=jnp.int32).astype(jnp.float32)
    deg_new = jnp.sum(new_i8, axis=1, dtype=jnp.int32).astype(jnp.float32)
    dinv_adj = jax.lax.rsqrt(jnp.maximum(deg_adj, 1.0)).reshape(Np, 1)
    dinv_new = jax.lax.rsqrt(jnp.maximum(deg_new, 1.0)).reshape(Np, 1)
    ones = jnp.ones((Np, 1), jnp.float32)
    valid = (jnp.arange(Np) < N).astype(jnp.float32).reshape(Np, 1)

    # Lane/row padding (pads stay exactly zero through every stage).
    feat_p = jnp.pad(feat.astype(jnp.float32), ((0, pad_n), (0, fin_p - in_hidden)))
    x_p = jnp.pad(x.astype(jnp.float32), ((0, pad_n), (0, fin_p - in_hidden)))
    matrix_p = jnp.pad(matrix.astype(jnp.float32), ((0, pad_n), (0, pad_n)))

    enc = _pad_block(params["enc"], fin_p, fmid_p)
    dec1 = _pad_block(params["dec1"], fmid_p, fin_p)
    dec2 = _pad_block(params["dec2"], fmid_p, fin_p)

    p1, p2, p3 = cfg["p1"], cfg["p2"], cfg["p3"]

    def layer(a_i8, xin, dinv, blk, do_l2norm=False):
        return gcn_layer(a_i8, xin, dinv, valid, blk["W"], blk["b"], blk["gamma"],
                         blk["beta"], blk["a_conv"], blk["a_act"],
                         n_real=N, do_l2norm=do_l2norm)

    # ---- Encoder (shared weights, two graphs) ---------------------------
    # TODO(synk): the two encoder passes could be batched into one kernel with a
    # leading graph axis to amortize weight loads / pipeline fill.
    h1 = layer(adj_i8, dropout(k_dp1a, x_p, p1), dinv_adj, enc)
    h2 = layer(new_i8, dropout(k_dp1b, feat_p, p1), dinv_new, enc)

    # ---- Decoders (norm='none' -> dinv = 1) ------------------------------
    h1 = layer(adj_i8, dropout(k_dp2, h1, p2), ones, dec1)
    h2 = layer(new_i8, dropout(k_dp3, h2, p3), ones, dec2, do_l2norm=True)

    # ---- losses ----------------------------------------------------------
    loss1, loss2 = losses(h1, feat_p, h2, matrix_p, valid,
                          n_real=N, sce_alpha=cfg["beta"])
    return cfg["alpha"] * loss1 + (1.0 - cfg["alpha"]) * loss2


# -----------------------------------------------------------------------------
if __name__ == "__main__":
    # Small but tiling-exercising: N is not a multiple of anything (padding path),
    # Np = 1536 -> 3 row tiles, 3 K tiles, 3 loss tiles.
    N, in_hidden, out_hidden = 1100, 200, 64

    cfg = dict(p1=0.2, p2=0.2, p3=0.2, beta=3, beta1=1.0, rate_node=0.5,
               rate_edge=0.5, alpha=0.5, noise_node=0.1, noise_edge=0.05)

    root = jax.random.PRNGKey(0)
    k_param, k_feat, k_adj, k_mat, k_fwd = jax.random.split(root, 5)

    params = init_params(k_param, in_hidden, out_hidden)

    feat = jax.random.normal(k_feat, (N, in_hidden), jnp.float32)
    # random undirected graph with self loops
    a = (jax.random.uniform(k_adj, (N, N)) < 0.02).astype(jnp.float32)
    a = jnp.minimum(a + a.T, 1.0)
    adj = jnp.minimum(a + jnp.eye(N, dtype=jnp.float32), 1.0)
    matrix = jax.random.normal(k_mat, (N, N), jnp.float32)

    loss = mg_forward(params, adj, feat, matrix, k_fwd, cfg)
    loss = jax.block_until_ready(loss)
    assert jnp.isfinite(loss), f"non-finite loss: {loss}"
    print("KERNEL_OK")
</pallas_src>

<mosaic_0001>
module attributes {stable_mosaic.version = 11 : i64} {
  func.func @_xw_kernel(%arg0: i32, %arg1: memref<512x256xf32, #tpu.memory_space<vmem>>, %arg2: memref<256x128xbf16, #tpu.memory_space<vmem>>, %arg3: memref<512x1xf32, #tpu.memory_space<vmem>>, %arg4: memref<512x128xbf16, #tpu.memory_space<vmem>>) attributes {dimension_semantics = [#tpu.dimension_semantics<parallel>], iteration_bounds = array<i64: 3>, scalar_prefetch = 0 : i64, scratch_operands = 0 : i64, tpu.core_type = #tpu.core_type<tc>, window_params = [{transform_indices = @transform_0, window_bounds = array<i64: 512, 256>}, {pipeline_mode = #tpu.pipeline_mode<synchronous>, transform_indices = @transform_1, window_bounds = array<i64: 256, 128>}, {transform_indices = @transform_2, window_bounds = array<i64: 512, 1>}, {transform_indices = @transform_3, window_bounds = array<i64: 512, 128>}]} {
    %c0 = arith.constant 0 : index
    %c0_0 = arith.constant 0 : index
    %0 = vector.load %arg1[%c0, %c0_0] : memref<512x256xf32, #tpu.memory_space<vmem>>, vector<512x256xf32>
    %1 = arith.truncf %0 : vector<512x256xf32> to vector<512x256xbf16>
    %c0_1 = arith.constant 0 : index
    %c0_2 = arith.constant 0 : index
    %2 = vector.load %arg2[%c0_1, %c0_2] : memref<256x128xbf16, #tpu.memory_space<vmem>>, vector<256x128xbf16>
    %cst = arith.constant dense<0.000000e+00> : vector<512x128xf32>
    %3 = tpu.matmul %1, %2, %cst {dimension_numbers = #tpu.dot_dimension_numbers<[1], [0], [0], [1], [0, 0, 1, 1], [], []>} : vector<512x256xbf16>, vector<256x128xbf16>, vector<512x128xf32> -> vector<512x128xf32>
    %c0_3 = arith.constant 0 : index
    %c0_4 = arith.constant 0 : index
    %4 = vector.load %arg3[%c0_3, %c0_4] : memref<512x1xf32, #tpu.memory_space<vmem>>, vector<512x1xf32>
    %5 = vector.broadcast %4 : vector<512x1xf32> to vector<512x128xf32>
    %6 = arith.mulf %3, %5 : vector<512x128xf32>
    %7 = arith.truncf %6 : vector<512x128xf32> to vector<512x128xbf16>
    %c0_5 = arith.constant 0 : index
    %c0_6 = arith.constant 0 : index
    %8 = vector.load %arg4[%c0_5, %c0_6] : memref<512x128xbf16, #tpu.memory_space<vmem>>, vector<512x128xbf16>
    tpu.vector_store %arg4[%c0_5, %c0_6], %7 {strides = array<i32>} : memref<512x128xbf16, #tpu.memory_space<vmem>>, vector<512x128xbf16>,
    return
  }
  func.func @transform_0(%arg0: i32) -> (i32, i32) {
    %c0_i32 = arith.constant 0 : i32
    %c0_i32_0 = arith.constant 0 : i32
    return %arg0, %c0_i32 : i32, i32
  }
  func.func @transform_1(%arg0: i32) -> (i32, i32) {
    %c0_i32 = arith.constant 0 : i32
    %c0_i32_0 = arith.constant 0 : i32
    %c0_i32_1 = arith.constant 0 : i32
    return %c0_i32, %c0_i32_0 : i32, i32
  }
  func.func @transform_2(%arg0: i32) -> (i32, i32) {
    %c0_i32 = arith.constant 0 : i32
    %c0_i32_0 = arith.constant 0 : i32
    return %arg0, %c0_i32 : i32, i32
  }
  func.func @transform_3(%arg0: i32) -> (i32, i32) {
    %c0_i32 = arith.constant 0 : i32
    %c0_i32_0 = arith.constant 0 : i32
    return %arg0, %c0_i32 : i32, i32
  }
}

</mosaic_0001>

<llo_original>
// kernel: tpu_custom_call.1
$region0: #{tpu_custom_call.1}
  #allocation0 [shape = 'u32[]', space=smem, size = 0x4, offset = 0x4, fixed_abs, tag = 'smem constant byte address 0x4 - core index']
  #allocation1 [shape = 'u32[144,128]{1,0:T(1,128)}', space=vmem, size = 0x12000, scoped, tag = 'internal scratch']
  %s0 = inlined_call_operand.hbm [shape: f32[1536,256], index: 0, kind: input, shape index: {}]
  %s1 = inlined_call_operand.hbm [shape: bf16[256,128], index: 1, kind: input, shape index: {}]
  %s2 = inlined_call_operand.vmem [shape: f32[1536,1], index: 2, kind: input, shape index: {}]
  %s3 = inlined_call_operand.hbm [shape: bf16[1536,128], index: 3, kind: output, shape index: {}]
  %s4 = sld [smem:[#allocation0]]
  $region53: #{tpu_custom_call.1} parent=0
    _
  %s6 = ssub.s32 1, %s4
  %s7 = scalar_select 0, %s6, %s4
  $region1: #{tpu_custom_call.1} parent=0
    #allocation2 [shape = 'u8[1048576]{0}', space=vmem, size = 0x100000, scoped, tag = 'input window, operand 0']
    #allocation3 [shape = 's32[2]{0}', space=sflag, size = 0x8, scoped, tag = 'scoped memory for tpu_custom_call.1']
    #allocation4 [shape = 's32[2]{0}', space=sflag, size = 0x8, scoped, tag = 'scoped memory for tpu_custom_call.1']
    #allocation5 [shape = 'u8[65536]{0}', space=vmem, size = 0x10000, scoped, tag = 'input window, operand 1, single buffered']
    #allocation6 [shape = 's32[1]{0}', space=sflag, size = 0x4, scoped, tag = 'scoped memory for tpu_custom_call.1']
    #allocation7 [shape = 'u8[262144]{0}', space=vmem, size = 0x40000, scoped, tag = 'output window, operand 0']
    %8 = vsyncpa [#allocation3], 0
    %s9 = scalar_lea.sflag [#allocation3], 1
    %10 = vsyncpa %s9, 0
    %11 = vsyncpa [#allocation6], 0
    %12 = vsyncpa [#allocation4], 0
    %s13 = scalar_lea.sflag [#allocation4], 1
    %14 = vsyncpa %s13, 0
    loop: start=0, step=1, limit=5
    $region2: #{tpu_custom_call.1} parent=1 // loop_pre_header
      _
    $region3: #{tpu_custom_call.1} parent=1 // loop_header
      %s16 = sphi 0, %s20
      %p17 = scmp.ge.s32.totalorder %s16, 5
      %s26 = sphi 0, %s28
      %s29 = sphi 0, %s26
      %s30 = sphi 0, %s29
      %s46 = sphi 0, %s30
      %s50 = sphi 0, %s50
      %s52 = sphi 0, %s50
      %s53 = sphi 0, %s52
      %s67 = sphi 0, %s53
      %s73 = sphi 0, %s75
      %s76 = sphi 0, %s73
      %s77 = sphi 0, %s76
      %s93 = sphi 0, %s77
      %s99 = sphi 0, %s101
      %s102 = sphi 0, %s99
      %s103 = sphi 0, %s102
      %s119 = sphi 0, %s103
    $region4: #{tpu_custom_call.1} parent=1 // loop_header_branch
      %19 = sbr.rel (%p17) target = $region8
    $region5: #{tpu_custom_call.1} parent=1 // loop_body
      %s21 = ssub.s32 %s16, 1
      %s22 = ssub.s32 %s16, 2
      %s23 = sadd.s32 %s16, 1
      %s24 = ssub.s32 %s16, %s23
      %p25 = scmp.eq.s32.totalorder %s24, 0
      %s27 = sadd.s32 %s26, 1
      %s28 = scalar_select %p25, %s26, %s27
      %p31 = pneg %p25
      %p32 = scmp.eq.s32.totalorder %s16, 2
      %p33 = por %p31, %p32
      %p34 = scmp.ne.s32.totalorder %s26, %s29
      %p35 = scmp.eq.s32.totalorder %s16, 0
      %p36 = por %p34, %p35
      %p37 = scmp.ne.s32.totalorder %s26, %s29
      %p38 = scmp.eq.s32.totalorder %s21, 2
      %p39 = por %p37, %p38
      %p40 = scmp.ne.s32.totalorder %s29, %s30
      %p41 = scmp.eq.s32.totalorder %s21, 0
      %p42 = por %p40, %p41
      %p43 = scmp.ne.s32.totalorder %s29, %s30
      %p44 = scmp.eq.s32.totalorder %s22, 2
      %p45 = por %p43, %p44
      %p47 = scmp.ne.s32.totalorder %s30, %s46
      %p48 = scmp.eq.s32.totalorder %s22, 0
      %p49 = por %p47, %p48
      %s51 = sadd.s32 %s50, 1
      %p54 = scmp.eq.s32.totalorder %s16, 2
      %p55 = scmp.ne.s32.totalorder %s50, %s52
      %p56 = scmp.eq.s32.totalorder %s16, 0
      %p57 = por %p55, %p56
      %p58 = scmp.ne.s32.totalorder %s50, %s52
      %p59 = scmp.eq.s32.totalorder %s21, 2
      %p60 = por %p58, %p59
      %p61 = scmp.ne.s32.totalorder %s52, %s53
      %p62 = scmp.eq.s32.totalorder %s21, 0
      %p63 = por %p61, %p62
      %p64 = scmp.ne.s32.totalorder %s52, %s53
      %p65 = scmp.eq.s32.totalorder %s22, 2
      %p66 = por %p64, %p65
      %p68 = scmp.ne.s32.totalorder %s53, %s67
      %p69 = scmp.eq.s32.totalorder %s22, 0
      %p70 = por %p68, %p69
      %s71 = ssub.s32 %s16, %s23
      %p72 = scmp.eq.s32.totalorder %s71, 0
      %s74 = sadd.s32 %s73, 1
      %s75 = scalar_select %p72, %s73, %s74
      %p78 = pneg %p72
      %p79 = scmp.eq.s32.totalorder %s16, 2
      %p80 = por %p78, %p79
      %p81 = scmp.ne.s32.totalorder %s73, %s76
      %p82 = scmp.eq.s32.totalorder %s16, 0
      %p83 = por %p81, %p82
      %p84 = scmp.ne.s32.totalorder %s73, %s76
      %p85 = scmp.eq.s32.totalorder %s21, 2
      %p86 = por %p84, %p85
      %p87 = scmp.ne.s32.totalorder %s76, %s77
      %p88 = scmp.eq.s32.totalorder %s21, 0
      %p89 = por %p87, %p88
      %p90 = scmp.ne.s32.totalorder %s76, %s77
      %p91 = scmp.eq.s32.totalorder %s22, 2
      %p92 = por %p90, %p91
      %p94 = scmp.ne.s32.totalorder %s77, %s93
      %p95 = scmp.eq.s32.totalorder %s22, 0
      %p96 = por %p94, %p95
      %s97 = ssub.s32 %s16, %s23
      %p98 = scmp.eq.s32.totalorder %s97, 0
      %s100 = sadd.s32 %s99, 1
      %s101 = scalar_select %p98, %s99, %s100
      %p104 = pneg %p98
      %p105 = scmp.eq.s32.totalorder %s16, 2
      %p106 = por %p104, %p105
      %p107 = scmp.ne.s32.totalorder %s99, %s102
      %p108 = scmp.eq.s32.totalorder %s16, 0
      %p109 = por %p107, %p108
      %p110 = scmp.ne.s32.totalorder %s99, %s102
      %p111 = scmp.eq.s32.totalorder %s21, 2
      %p112 = por %p110, %p111
      %p113 = scmp.ne.s32.totalorder %s102, %s103
      %p114 = scmp.eq.s32.totalorder %s21, 0
      %p115 = por %p113, %p114
      %p116 = scmp.ne.s32.totalorder %s102, %s103
      %p117 = scmp.eq.s32.totalorder %s22, 2
      %p118 = por %p116, %p117
      %p120 = scmp.ne.s32.totalorder %s103, %s119
      %p121 = scmp.eq.s32.totalorder %s22, 0
      %p122 = por %p120, %p121
      %p123 = scmp.le.s32.totalorder 1, %s16
      %p124 = scmp.lt.s32.totalorder %s16, 4
      %p125 = pnand %p123, %p124
      %p126 = pneg %p125
      // Predicated region
      $region9: #{tpu_custom_call.1} parent=5 // pred_check
        _
      $region10: #{tpu_custom_call.1} parent=5 // pred_check_branch
        %128 = sbr.rel (%p125) target = $region12
      $region11: #{tpu_custom_call.1} parent=5 // pred_region
        %s129 = ssub.s32 %s16, 1
        // Predicated region
        $region13: #{tpu_custom_call.1} parent=11 // pred_check
          %p130 = pneg %p63
        $region14: #{tpu_custom_call.1} parent=11 // pred_check_branch
          %132 = sbr.rel (%p130) target = $region16
        $region15: #{tpu_custom_call.1} parent=11 // pred_region
          %s134 = ssub.s32 2048, 2048
          %135 = vsyncadd [#allocation6], %s134
          %s136 = sshll.u32 [#allocation5], 4
          %s137 = int_to_ptr.vmem [resolvable:$true] %s136
          %142 = dma.hbm_to_vmem [thread:$0]  %s1, 2048, %s137, [#allocation6], 64, 64, 4
        $region16: #{tpu_custom_call.1} parent=11 // pred_fallthru
          _
      $region12: #{tpu_custom_call.1} parent=5 // pred_fallthru
        _
      %p143 = scmp.lt.s32.totalorder %s16, 3
      // Predicated region
      $region17: #{tpu_custom_call.1} parent=5 // pred_check
        %p144 = pneg %p143
      $region18: #{tpu_custom_call.1} parent=5 // pred_check_branch
        %146 = sbr.rel (%p144) target = $region20
      $region19: #{tpu_custom_call.1} parent=5 // pred_region
        // Predicated region
        $region21: #{tpu_custom_call.1} parent=19 // pred_check
          %p147 = pneg %p36
        $region22: #{tpu_custom_call.1} parent=19 // pred_check_branch
          %149 = sbr.rel (%p147) target = $region24
        $region23: #{tpu_custom_call.1} parent=19 // pred_region
          %s150 = sand.u32 %s26, 1
          %s151 = scalar_lea.sflag [#allocation3], %s150
          %s152 = sand.u32 %s26, 1
          %s153 = smul.addr %s152, 1024
          %s154 = scalar_lea.vmem [#allocation2], %s153
          %s155 = smul.u32 64, %s16
          %s157 = ssub.s32 16384, 16384
          %158 = vsyncadd %s151, %s157
          %s159 = smul.addr %s155, 2
          %s160 = smul.addr %s159, 128
          %s161 = scalar_lea.hbm %s0, %s160
          %s162 = sshll.u32 %s154, 4
          %s163 = int_to_ptr.vmem [resolvable:$true] %s162
          %168 = dma.hbm_to_vmem [thread:$0]  %s161, 16384, %s163, %s151, 256, 256, 16
        $region24: #{tpu_custom_call.1} parent=19 // pred_fallthru
          _
        // Predicated region
        $region25: #{tpu_custom_call.1} parent=19 // pred_check
          %p169 = pneg %p83
        $region26: #{tpu_custom_call.1} parent=19 // pred_check_branch
          %171 = sbr.rel (%p169) target = $region28
        $region27: #{tpu_custom_call.1} parent=19 // pred_region
          %s172 = smul.u32 64, %s16
          %p173 = scmp.lt.s32.totalorder %s172, 191
          %s174 = scalar_select %p173, %s172, 191
          %s175 = smul.addr %s174, 8
          %s176 = scalar_lea.vmem %s2, %s175
          %s177 = smul.u32 64, %s16
        $region28: #{tpu_custom_call.1} parent=19 // pred_fallthru
          _
      $region20: #{tpu_custom_call.1} parent=5 // pred_fallthru
        _
      %p178 = scmp.le.s32.totalorder 1, %s16
      %p179 = scmp.lt.s32.totalorder %s16, 4
      %p180 = pnand %p178, %p179
      %p181 = pneg %p180
      // Predicated region
      $region29: #{tpu_custom_call.1} parent=5 // pred_check
        _
      $region30: #{tpu_custom_call.1} parent=5 // pred_check_branch
        %183 = sbr.rel (%p180) target = $region32
      $region31: #{tpu_custom_call.1} parent=5 // pred_region
        %s184 = ssub.s32 %s16, 1
        %s185 = sand.u32 %s29, 1
        %s186 = scalar_lea.sflag [#allocation3], %s185
        %s187 = sand.u32 %s29, 1
        %s188 = smul.addr %s187, 1024
        %s189 = scalar_lea.vmem [#allocation2], %s188
        // Predicated region
        $region33: #{tpu_custom_call.1} parent=31 // pred_check
          %p190 = pneg %p42
        $region34: #{tpu_custom_call.1} parent=31 // pred_check_branch
          %192 = sbr.rel (%p190) target = $region36
        $region35: #{tpu_custom_call.1} parent=31 // pred_region
          %193 = dma.done %s186, 16384
        $region36: #{tpu_custom_call.1} parent=31 // pred_fallthru
          _
        // Predicated region
        $region37: #{tpu_custom_call.1} parent=31 // pred_check
          %p194 = pneg %p63
        $region38: #{tpu_custom_call.1} parent=31 // pred_check_branch
          %196 = sbr.rel (%p194) target = $region40
        $region39: #{tpu_custom_call.1} parent=31 // pred_region
          %197 = dma.done [#allocation6], 2048
        $region40: #{tpu_custom_call.1} parent=31 // pred_fallthru
          _
        %s198 = sand.u32 %s29, 1
        %s199 = scalar_lea.sflag [#allocation3], %s198
        %s200 = sand.u32 %s29, 1
        %s201 = smul.addr %s200, 1024
        %s202 = scalar_lea.vmem [#allocation2], %s201
        %p203 = pneg %p42
        %p204 = pneg %p39
        %p205 = pneg %p63
        %p206 = pneg %p60
        %s207 = smul.u32 64, %s21
        %p208 = scmp.lt.s32.totalorder %s207, 191
        %s209 = scalar_select %p208, %s207, 191
        %s210 = smul.addr %s209, 8
        %s211 = scalar_lea.vmem %s2, %s210
        %p212 = pneg %p89
        %p213 = pneg %p86
        %p214 = pneg %p115
        %p215 = pneg %p112
        %s216 = sand.u32 %s102, 1
        %s217 = scalar_lea.sflag [#allocation4], %s216
        %s218 = sand.u32 %s102, 1
        %s219 = smul.addr %s218, 256
        %s220 = scalar_lea.vmem [#allocation7], %s219
        %s221 = smul.u32 64, %s21
        %s222 = smul.u32 64, %s21
        %p223 = scmp.lt.s32.totalorder %s222, 191
        %s224 = scalar_select %p223, %s222, 191
        %s225 = smul.addr %s224, 8
        %s226 = scalar_lea.vmem %s2, %s225
        %s227 = smul.u32 64, %s21
        %s228 = smul.u32 64, %s21
        %v230 = vld [vmem:[%s189] sm:$0xff]
        %v231 = vld [vmem:[%s189 + $0x8] sm:$0xff]
        %v232 = vld [vmem:[%s189 + $0x10] sm:$0xff]
        %v233 = vld [vmem:[%s189 + $0x18] sm:$0xff]
        %v234 = vld [vmem:[%s189 + $0x20] sm:$0xff]
        %v235 = vld [vmem:[%s189 + $0x28] sm:$0xff]
        %v236 = vld [vmem:[%s189 + $0x30] sm:$0xff]
        %v237 = vld [vmem:[%s189 + $0x38] sm:$0xff]
        %v238 = vld [vmem:[%s189 + $0x40] sm:$0xff]
        %v239 = vld [vmem:[%s189 + $0x48] sm:$0xff]
        %v240 = vld [vmem:[%s189 + $0x50] sm:$0xff]
        %v241 = vld [vmem:[%s189 + $0x58] sm:$0xff]
        %v242 = vld [vmem:[%s189 + $0x60] sm:$0xff]
        %v243 = vld [vmem:[%s189 + $0x68] sm:$0xff]
        %v244 = vld [vmem:[%s189 + $0x70] sm:$0xff]
        %v245 = vld [vmem:[%s189 + $0x78] sm:$0xff]
        %v246 = vld [vmem:[%s189 + $0x80] sm:$0xff]
        %v247 = vld [vmem:[%s189 + $0x88] sm:$0xff]
        %v248 = vld [vmem:[%s189 + $0x90] sm:$0xff]
        %v249 = vld [vmem:[%s189 + $0x98] sm:$0xff]
        %v250 = vld [vmem:[%s189 + $0xa0] sm:$0xff]
        %v251 = vld [vmem:[%s189 + $0xa8] sm:$0xff]
        %v252 = vld [vmem:[%s189 + $0xb0] sm:$0xff]
        %v253 = vld [vmem:[%s189 + $0xb8] sm:$0xff]
        %v254 = vld [vmem:[%s189 + $0xc0] sm:$0xff]
        %v255 = vld [vmem:[%s189 + $0xc8] sm:$0xff]
        %v256 = vld [vmem:[%s189 + $0xd0] sm:$0xff]
        %v257 = vld [vmem:[%s189 + $0xd8] sm:$0xff]
        %v258 = vld [vmem:[%s189 + $0xe0] sm:$0xff]
        %v259 = vld [vmem:[%s189 + $0xe8] sm:$0xff]
        %v260 = vld [vmem:[%s189 + $0xf0] sm:$0xff]
        %v261 = vld [vmem:[%s189 + $0xf8] sm:$0xff]
        %v262 = vld [vmem:[%s189 + $0x100] sm:$0xff]
        %v263 = vld [vmem:[%s189 + $0x108] sm:$0xff]
        %v264 = vld [vmem:[%s189 + $0x110] sm:$0xff]
        %v265 = vld [vmem:[%s189 + $0x118] sm:$0xff]
        %v266 = vld [vmem:[%s189 + $0x120] sm:$0xff]
        %v267 = vld [vmem:[%s189 + $0x128] sm:$0xff]
        %v268 = vld [vmem:[%s189 + $0x130] sm:$0xff]
        %v269 = vld [vmem:[%s189 + $0x138] sm:$0xff]
        %v270 = vld [vmem:[%s189 + $0x140] sm:$0xff]
        %v271 = vld [vmem:[%s189 + $0x148] sm:$0xff]
        %v272 = vld [vmem:[%s189 + $0x150] sm:$0xff]
        %v273 = vld [vmem:[%s189 + $0x158] sm:$0xff]
        %v274 = vld [vmem:[%s189 + $0x160] sm:$0xff]
        %v275 = vld [vmem:[%s189 + $0x168] sm:$0xff]
        %v276 = vld [vmem:[%s189 + $0x170] sm:$0xff]
        %v277 = vld [vmem:[%s189 + $0x178] sm:$0xff]
        %v278 = vld [vmem:[%s189 + $0x180] sm:$0xff]
        %v279 = vld [vmem:[%s189 + $0x188] sm:$0xff]
        %v280 = vld [vmem:[%s189 + $0x190] sm:$0xff]
        %v281 = vld [vmem:[%s189 + $0x198] sm:$0xff]
        %v282 = vld [vmem:[%s189 + $0x1a0] sm:$0xff]
        %v283 = vld [vmem:[%s189 + $0x1a8] sm:$0xff]
        %v284 = vld [vmem:[%s189 + $0x1b0] sm:$0xff]
        %v285 = vld [vmem:[%s189 + $0x1b8] sm:$0xff]
        %v286 = vld [vmem:[%s189 + $0x1c0] sm:$0xff]
        %v287 = vld [vmem:[%s189 + $0x1c8] sm:$0xff]
        %v288 = vld [vmem:[%s189 + $0x1d0] sm:$0xff]
        %v289 = vld [vmem:[%s189 + $0x1d8] sm:$0xff]
        %v290 = vld [vmem:[%s189 + $0x1e0] sm:$0xff]
        %v291 = vld [vmem:[%s189 + $0x1e8] sm:$0xff]
        %v292 = vld [vmem:[%s189 + $0x1f0] sm:$0xff]
        %v293 = vld [vmem:[%s189 + $0x1f8] sm:$0xff]
        %v294 = vld [vmem:[%s189 + $0x200] sm:$0xff]
        %v295 = vld [vmem:[%s189 + $0x208] sm:$0xff]
        %v296 = vld [vmem:[%s189 + $0x210] sm:$0xff]
        %v297 = vld [vmem:[%s189 + $0x218] sm:$0xff]
        %v298 = vld [vmem:[%s189 + $0x220] sm:$0xff]
        %v299 = vld [vmem:[%s189 + $0x228] sm:$0xff]
        %v300 = vld [vmem:[%s189 + $0x230] sm:$0xff]
        %v301 = vld [vmem:[%s189 + $0x238] sm:$0xff]
        %v302 = vld [vmem:[%s189 + $0x240] sm:$0xff]
        %v303 = vld [vmem:[%s189 + $0x248] sm:$0xff]
        %v304 = vld [vmem:[%s189 + $0x250] sm:$0xff]
        %v305 = vld [vmem:[%s189 + $0x258] sm:$0xff]
        %v306 = vld [vmem:[%s189 + $0x260] sm:$0xff]
        %v307 = vld [vmem:[%s189 + $0x268] sm:$0xff]
        %v308 = vld [vmem:[%s189 + $0x270] sm:$0xff]
        %v309 = vld [vmem:[%s189 + $0x278] sm:$0xff]
        %v310 = vld [vmem:[%s189 + $0x280] sm:$0xff]
        %v311 = vld [vmem:[%s189 + $0x288] sm:$0xff]
        %v312 = vld [vmem:[%s189 + $0x290] sm:$0xff]
        %v313 = vld [vmem:[%s189 + $0x298] sm:$0xff]
        %v314 = vld [vmem:[%s189 + $0x2a0] sm:$0xff]
        %v315 = vld [vmem:[%s189 + $0x2a8] sm:$0xff]
        %v316 = vld [vmem:[%s189 + $0x2b0] sm:$0xff]
        %v317 = vld [vmem:[%s189 + $0x2b8] sm:$0xff]
        %v318 = vld [vmem:[%s189 + $0x2c0] sm:$0xff]
        %v319 = vld [vmem:[%s189 + $0x2c8] sm:$0xff]
        %v320 = vld [vmem:[%s189 + $0x2d0] sm:$0xff]
        %v321 = vld [vmem:[%s189 + $0x2d8] sm:$0xff]
        %v322 = vld [vmem:[%s189 + $0x2e0] sm:$0xff]
        %v323 = vld [vmem:[%s189 + $0x2e8] sm:$0xff]
        %v324 = vld [vmem:[%s189 + $0x2f0] sm:$0xff]
        %v325 = vld [vmem:[%s189 + $0x2f8] sm:$0xff]
        %v326 = vld [vmem:[%s189 + $0x300] sm:$0xff]
        %v327 = vld [vmem:[%s189 + $0x308] sm:$0xff]
        %v328 = vld [vmem:[%s189 + $0x310] sm:$0xff]
        %v329 = vld [vmem:[%s189 + $0x318] sm:$0xff]
        %v330 = vld [vmem:[%s189 + $0x320] sm:$0xff]
        %v331 = vld [vmem:[%s189 + $0x328] sm:$0xff]
        %v332 = vld [vmem:[%s189 + $0x330] sm:$0xff]
        %v333 = vld [vmem:[%s189 + $0x338] sm:$0xff]
        %v334 = vld [vmem:[%s189 + $0x340] sm:$0xff]
        %v335 = vld [vmem:[%s189 + $0x348] sm:$0xff]
        %v336 = vld [vmem:[%s189 + $0x350] sm:$0xff]
        %v337 = vld [vmem:[%s189 + $0x358] sm:$0xff]
        %v338 = vld [vmem:[%s189 + $0x360] sm:$0xff]
        %v339 = vld [vmem:[%s189 + $0x368] sm:$0xff]
        %v340 = vld [vmem:[%s189 + $0x370] sm:$0xff]
        %v341 = vld [vmem:[%s189 + $0x378] sm:$0xff]
        %v342 = vld [vmem:[%s189 + $0x380] sm:$0xff]
        %v343 = vld [vmem:[%s189 + $0x388] sm:$0xff]
        %v344 = vld [vmem:[%s189 + $0x390] sm:$0xff]
        %v345 = vld [vmem:[%s189 + $0x398] sm:$0xff]
        %v346 = vld [vmem:[%s189 + $0x3a0] sm:$0xff]
        %v347 = vld [vmem:[%s189 + $0x3a8] sm:$0xff]
        %v348 = vld [vmem:[%s189 + $0x3b0] sm:$0xff]
        %v349 = vld [vmem:[%s189 + $0x3b8] sm:$0xff]
        %v350 = vld [vmem:[%s189 + $0x3c0] sm:$0xff]
        %v351 = vld [vmem:[%s189 + $0x3c8] sm:$0xff]
        %v352 = vld [vmem:[%s189 + $0x3d0] sm:$0xff]
        %v353 = vld [vmem:[%s189 + $0x3d8] sm:$0xff]
        %v354 = vld [vmem:[%s189 + $0x3e0] sm:$0xff]
        %v355 = vld [vmem:[%s189 + $0x3e8] sm:$0xff]
        %v356 = vld [vmem:[%s189 + $0x3f0] sm:$0xff]
        %v357 = vld [vmem:[%s189 + $0x3f8] sm:$0xff]
        %v358 = vpack.c.bf16 %v232, %v230
        %v359 = vpack.c.bf16 %v233, %v231
        %v360 = vpack.c.bf16 %v236, %v234
        %v361 = vpack.c.bf16 %v237, %v235
        %v362 = vpack.c.bf16 %v240, %v238
        %v363 = vpack.c.bf16 %v241, %v239
        %v364 = vpack.c.bf16 %v244, %v242
        %v365 = vpack.c.bf16 %v245, %v243
        %v366 = vpack.c.bf16 %v248, %v246
        %v367 = vpack.c.bf16 %v249, %v247
        %v368 = vpack.c.bf16 %v252, %v250
        %v369 = vpack.c.bf16 %v253, %v251
        %v370 = vpack.c.bf16 %v256, %v254
        %v371 = vpack.c.bf16 %v257, %v255
        %v372 = vpack.c.bf16 %v260, %v258
        %v373 = vpack.c.bf16 %v261, %v259
        %v374 = vpack.c.bf16 %v264, %v262
        %v375 = vpack.c.bf16 %v265, %v263
        %v376 = vpack.c.bf16 %v268, %v266
        %v377 = vpack.c.bf16 %v269, %v267
        %v378 = vpack.c.bf16 %v272, %v270
        %v379 = vpack.c.bf16 %v273, %v271
        %v380 = vpack.c.bf16 %v276, %v274
        %v381 = vpack.c.bf16 %v277, %v275
        %v382 = vpack.c.bf16 %v280, %v278
        %v383 = vpack.c.bf16 %v281, %v279
        %v384 = vpack.c.bf16 %v284, %v282
        %v385 = vpack.c.bf16 %v285, %v283
        %v386 = vpack.c.bf16 %v288, %v286
        %v387 = vpack.c.bf16 %v289, %v287
        %v388 = vpack.c.bf16 %v292, %v290
        %v389 = vpack.c.bf16 %v293, %v291
        %v390 = vpack.c.bf16 %v296, %v294
        %v391 = vpack.c.bf16 %v297, %v295
        %v392 = vpack.c.bf16 %v300, %v298
        %v393 = vpack.c.bf16 %v301, %v299
        %v394 = vpack.c.bf16 %v304, %v302
        %v395 = vpack.c.bf16 %v305, %v303
        %v396 = vpack.c.bf16 %v308, %v306
        %v397 = vpack.c.bf16 %v309, %v307
        %v398 = vpack.c.bf16 %v312, %v310
        %v399 = vpack.c.bf16 %v313, %v311
        %v400 = vpack.c.bf16 %v316, %v314
        %v401 = vpack.c.bf16 %v317, %v315
        %v402 = vpack.c.bf16 %v320, %v318
        %v403 = vpack.c.bf16 %v321, %v319
        %v404 = vpack.c.bf16 %v324, %v322
        %v405 = vpack.c.bf16 %v325, %v323
        %v406 = vpack.c.bf16 %v328, %v326
        %v407 = vpack.c.bf16 %v329, %v327
        %v408 = vpack.c.bf16 %v332, %v330
        %v409 = vpack.c.bf16 %v333, %v331
        %v410 = vpack.c.bf16 %v336, %v334
        %v411 = vpack.c.bf16 %v337, %v335
        %v412 = vpack.c.bf16 %v340, %v338
        %v413 = vpack.c.bf16 %v341, %v339
        %v414 = vpack.c.bf16 %v344, %v342
        %v415 = vpack.c.bf16 %v345, %v343
        %v416 = vpack.c.bf16 %v348, %v346
        %v417 = vpack.c.bf16 %v349, %v347
        %v418 = vpack.c.bf16 %v352, %v350
        %v419 = vpack.c.bf16 %v353, %v351
        %v420 = vpack.c.bf16 %v356, %v354
        %v421 = vpack.c.bf16 %v357, %v355
        %v422 = vld [vmem:[#allocation5] sm:$0xf]
        %v423 = vld [vmem:[#allocation5 + $0x4] sm:$0xf]
        %v424 = vld [vmem:[#allocation5 + $0x8] sm:$0xf]
        %v425 = vld [vmem:[#allocation5 + $0xc] sm:$0xf]
        %v426 = vld [vmem:[#allocation5 + $0x10] sm:$0xf]
        %v427 = vld [vmem:[#allocation5 + $0x14] sm:$0xf]
        %v428 = vld [vmem:[#allocation5 + $0x18] sm:$0xf]
        %v429 = vld [vmem:[#allocation5 + $0x1c] sm:$0xf]
        %v430 = vld [vmem:[#allocation5 + $0x20] sm:$0xf]
        %v431 = vld [vmem:[#allocation5 + $0x24] sm:$0xf]
        %v432 = vld [vmem:[#allocation5 + $0x28] sm:$0xf]
        %v433 = vld [vmem:[#allocation5 + $0x2c] sm:$0xf]
        %v434 = vld [vmem:[#allocation5 + $0x30] sm:$0xf]
        %v435 = vld [vmem:[#allocation5 + $0x34] sm:$0xf]
        %v436 = vld [vmem:[#allocation5 + $0x38] sm:$0xf]
        %v437 = vld [vmem:[#allocation5 + $0x3c] sm:$0xf]
        %v438 = vld [vmem:[#allocation5 + $0x40] sm:$0xf]
        %v439 = vld [vmem:[#allocation5 + $0x44] sm:$0xf]
        %v440 = vld [vmem:[#allocation5 + $0x48] sm:$0xf]
        %v441 = vld [vmem:[#allocation5 + $0x4c] sm:$0xf]
        %v442 = vld [vmem:[#allocation5 + $0x50] sm:$0xf]
        %v443 = vld [vmem:[#allocation5 + $0x54] sm:$0xf]
        %v444 = vld [vmem:[#allocation5 + $0x58] sm:$0xf]
        %v445 = vld [vmem:[#allocation5 + $0x5c] sm:$0xf]
        %v446 = vld [vmem:[#allocation5 + $0x60] sm:$0xf]
        %v447 = vld [vmem:[#allocation5 + $0x64] sm:$0xf]
        %v448 = vld [vmem:[#allocation5 + $0x68] sm:$0xf]
        %v449 = vld [vmem:[#allocation5 + $0x6c] sm:$0xf]
        %v450 = vld [vmem:[#allocation5 + $0x70] sm:$0xf]
        %v451 = vld [vmem:[#allocation5 + $0x74] sm:$0xf]
        %v452 = vld [vmem:[#allocation5 + $0x78] sm:$0xf]
        %v453 = vld [vmem:[#allocation5 + $0x7c] sm:$0xf]
        %v486 = vunpack.c.l.b16 %v422
        %v487 = vunpack.c.l.b16 %v423
        %v488 = vunpack.c.l.b16 %v424
        %v489 = vunpack.c.l.b16 %v425
        %v490 = vunpack.c.l.b16 %v426
        %v491 = vunpack.c.l.b16 %v427
        %v492 = vunpack.c.l.b16 %v428
        %v493 = vunpack.c.l.b16 %v429
        %v494 = vunpack.c.l.b16 %v430
        %v495 = vunpack.c.l.b16 %v431
        %v496 = vunpack.c.l.b16 %v432
        %v497 = vunpack.c.l.b16 %v433
        %v498 = vunpack.c.l.b16 %v434
        %v499 = vunpack.c.l.b16 %v435
        %v500 = vunpack.c.l.b16 %v436
        %v501 = vunpack.c.l.b16 %v437
        %v502 = vunpack.c.l.b16 %v438
        %v503 = vunpack.c.l.b16 %v439
        %v504 = vunpack.c.l.b16 %v440
        %v505 = vunpack.c.l.b16 %v441
        %v506 = vunpack.c.l.b16 %v442
        %v507 = vunpack.c.l.b16 %v443
        %v508 = vunpack.c.l.b16 %v444
        %v509 = vunpack.c.l.b16 %v445
        %v510 = vunpack.c.l.b16 %v446
        %v511 = vunpack.c.l.b16 %v447
        %v512 = vunpack.c.l.b16 %v448
        %v513 = vunpack.c.l.b16 %v449
        %v514 = vunpack.c.l.b16 %v450
        %v515 = vunpack.c.l.b16 %v451
        %v516 = vunpack.c.l.b16 %v452
        %v517 = vunpack.c.l.b16 %v453
        %v518 = vpack.c.b16 %v487, %v486
        %v519 = vpack.c.b16 %v489, %v488
        %v520 = vpack.c.b16 %v491, %v490
        %v521 = vpack.c.b16 %v493, %v492
        %v522 = vpack.c.b16 %v495, %v494
        %v523 = vpack.c.b16 %v497, %v496
        %v524 = vpack.c.b16 %v499, %v498
        %v525 = vpack.c.b16 %v501, %v500
        %v526 = vpack.c.b16 %v503, %v502
        %v527 = vpack.c.b16 %v505, %v504
        %v528 = vpack.c.b16 %v507, %v506
        %v529 = vpack.c.b16 %v509, %v508
        %v530 = vpack.c.b16 %v511, %v510
        %v531 = vpack.c.b16 %v513, %v512
        %v532 = vpack.c.b16 %v515, %v514
        %v533 = vpack.c.b16 %v517, %v516
        %550 = vmatprep.subr.bf16.mxu0 0
        %551 = vmatpush1.bf16.msra.mxu0 %v525
        %552 = vmatprep.subr.bf16.mxu0 0
        %553 = vmatpush1.bf16.msra.mxu0 %v524
        %554 = vmatprep.subr.bf16.mxu0 0
        %555 = vmatpush1.bf16.msra.mxu0 %v523
        %556 = vmatprep.subr.bf16.mxu0 0
        %557 = vmatpush1.bf16.msra.mxu0 %v522
        %558 = vmatprep.subr.bf16.mxu0 0
        %559 = vmatpush1.bf16.msra.mxu0 %v521
        %560 = vmatprep.subr.bf16.mxu0 0
        %561 = vmatpush1.bf16.msra.mxu0 %v520
        %562 = vmatprep.subr.bf16.mxu0 0
        %563 = vmatpush1.bf16.msra.mxu0 %v519
        %564 = vmatprep.subr.bf16.mxu0 0
        %565 = vmatpush1.bf16.msra.mxu0 %v518
        %566 = vmatprep.subr.bf16.mxu0 0
        %567 = vmatpush2.bf16.msra.mxu0 %v533
        %568 = vmatprep.subr.bf16.mxu0 0
        %569 = vmatpush2.bf16.msra.mxu0 %v532
        %570 = vmatprep.subr.bf16.mxu0 0
        %571 = vmatpush2.bf16.msra.mxu0 %v531
        %572 = vmatprep.subr.bf16.mxu0 0
        %573 = vmatpush2.bf16.msra.mxu0 %v530
        %574 = vmatprep.subr.bf16.mxu0 0
        %575 = vmatpush2.bf16.msra.mxu0 %v529
        %576 = vmatprep.subr.bf16.mxu0 0
        %577 = vmatpush2.bf16.msra.mxu0 %v528
        %578 = vmatprep.subr.bf16.mxu0 0
        %579 = vmatpush2.bf16.msra.mxu0 %v527
        %580 = vmatprep.subr.bf16.mxu0 0
        %581 = vmatpush2.bf16.msra.mxu0 %v526
        %582 = vmatprep.mubr.bf16.mxu0 %v359
        %583 = vmatmul.mubr.bf16.gmra.mxu0 %v358
        %v584 = vpop.f32.mrf.mxu0
        %v585 = vadd.f32 0.0, %v584
        %v586 = vpop.f32.mrf.mxu0
        %v587 = vpop.f32.mrf.mxu0
        %v588 = vadd.f32 0.0, %v587
        %v589 = vpop.f32.mrf.mxu0
        %590 = vmatprep.mubr.bf16.mxu0 %v361
        %591 = vmatmul.mubr.bf16.gmra.mxu0 %v360
        %v592 = vpop.f32.mrf.mxu0
        %v593 = vadd.f32 0.0, %v592
        %v594 = vpop.f32.mrf.mxu0
        %v595 = vpop.f32.mrf.mxu0
        %v596 = vadd.f32 0.0, %v595
        %v597 = vpop.f32.mrf.mxu0
        %598 = vmatprep.mubr.bf16.mxu0 %v363
        %599 = vmatmul.mubr.bf16.gmra.mxu0 %v362
        %v600 = vpop.f32.mrf.mxu0
        %v601 = vadd.f32 0.0, %v600
        %v602 = vpop.f32.mrf.mxu0
        %v603 = vpop.f32.mrf.mxu0
        %v604 = vadd.f32 0.0, %v603
        %v605 = vpop.f32.mrf.mxu0
        %606 = vmatprep.mubr.bf16.mxu0 %v365
        %607 = vmatmul.mubr.bf16.gmra.mxu0 %v364
        %v608 = vpop.f32.mrf.mxu0
        %v609 = vadd.f32 0.0, %v608
        %v610 = vpop.f32.mrf.mxu0
        %v611 = vpop.f32.mrf.mxu0
        %v612 = vadd.f32 0.0, %v611
        %v613 = vpop.f32.mrf.mxu0
        %614 = vmatprep.mubr.bf16.mxu0 %v367
        %615 = vmatmul.mubr.bf16.gmra.mxu0 %v366
        %v616 = vpop.f32.mrf.mxu0
        %v617 = vadd.f32 0.0, %v616
        %v618 = vpop.f32.mrf.mxu0
        %v619 = vpop.f32.mrf.mxu0
        %v620 = vadd.f32 0.0, %v619
        %v621 = vpop.f32.mrf.mxu0
        %622 = vmatprep.mubr.bf16.mxu0 %v369
        %623 = vmatmul.mubr.bf16.gmra.mxu0 %v368
        %v624 = vpop.f32.mrf.mxu0
        %v625 = vadd.f32 0.0, %v624
        %v626 = vpop.f32.mrf.mxu0
        %v627 = vpop.f32.mrf.mxu0
        %v628 = vadd.f32 0.0, %v627
        %v629 = vpop.f32.mrf.mxu0
        %630 = vmatprep.mubr.bf16.mxu0 %v371
        %631 = vmatmul.mubr.bf16.gmra.mxu0 %v370
        %v632 = vpop.f32.mrf.mxu0
        %v633 = vadd.f32 0.0, %v632
        %v634 = vpop.f32.mrf.mxu0
        %v635 = vpop.f32.mrf.mxu0
        %v636 = vadd.f32 0.0, %v635
        %v637 = vpop.f32.mrf.mxu0
        %638 = vmatprep.mubr.bf16.mxu0 %v373
        %639 = vmatmul.mubr.bf16.gmra.mxu0 %v372
        %v640 = vpop.f32.mrf.mxu0
        %v641 = vadd.f32 0.0, %v640
        %v642 = vpop.f32.mrf.mxu0
        %v643 = vpop.f32.mrf.mxu0
        %v644 = vadd.f32 0.0, %v643
        %v645 = vpop.f32.mrf.mxu0
        %646 = vmatprep.mubr.bf16.mxu0 %v375
        %647 = vmatmul.mubr.bf16.gmra.mxu0 %v374
        %v648 = vpop.f32.mrf.mxu0
        %v649 = vadd.f32 0.0, %v648
        %v650 = vpop.f32.mrf.mxu0
        %v651 = vpop.f32.mrf.mxu0
        %v652 = vadd.f32 0.0, %v651
        %v653 = vpop.f32.mrf.mxu0
        %654 = vmatprep.mubr.bf16.mxu0 %v377
        %655 = vmatmul.mubr.bf16.gmra.mxu0 %v376
        %v656 = vpop.f32.mrf.mxu0
        %v657 = vadd.f32 0.0, %v656
        %v658 = vpop.f32.mrf.mxu0
        %v659 = vpop.f32.mrf.mxu0
        %v660 = vadd.f32 0.0, %v659
        %v661 = vpop.f32.mrf.mxu0
        %662 = vmatprep.mubr.bf16.mxu0 %v379
        %663 = vmatmul.mubr.bf16.gmra.mxu0 %v378
        %v664 = vpop.f32.mrf.mxu0
        %v665 = vadd.f32 0.0, %v664
        %v666 = vpop.f32.mrf.mxu0
        %v667 = vpop.f32.mrf.mxu0
        %v668 = vadd.f32 0.0, %v667
        %v669 = vpop.f32.mrf.mxu0
        %670 = vmatprep.mubr.bf16.mxu0 %v381
        %671 = vmatmul.mubr.bf16.gmra.mxu0 %v380
        %v672 = vpop.f32.mrf.mxu0
        %v673 = vadd.f32 0.0, %v672
        %v674 = vpop.f32.mrf.mxu0
        %v675 = vpop.f32.mrf.mxu0
        %v676 = vadd.f32 0.0, %v675
        %v677 = vpop.f32.mrf.mxu0
        %678 = vmatprep.mubr.bf16.mxu0 %v383
        %679 = vmatmul.mubr.bf16.gmra.mxu0 %v382
        %v680 = vpop.f32.mrf.mxu0
        %v681 = vadd.f32 0.0, %v680
        %v682 = vpop.f32.mrf.mxu0
        %v683 = vpop.f32.mrf.mxu0
        %v684 = vadd.f32 0.0, %v683
        %v685 = vpop.f32.mrf.mxu0
        %686 = vmatprep.mubr.bf16.mxu0 %v385
        %687 = vmatmul.mubr.bf16.gmra.mxu0 %v384
        %v688 = vpop.f32.mrf.mxu0
        %v689 = vadd.f32 0.0, %v688
        %v690 = vpop.f32.mrf.mxu0
        %v691 = vpop.f32.mrf.mxu0
        %v692 = vadd.f32 0.0, %v691
        %v693 = vpop.f32.mrf.mxu0
        %694 = vmatprep.mubr.bf16.mxu0 %v387
        %695 = vmatmul.mubr.bf16.gmra.mxu0 %v386
        %v696 = vpop.f32.mrf.mxu0
        %v697 = vadd.f32 0.0, %v696
        %v698 = vpop.f32.mrf.mxu0
        %v699 = vpop.f32.mrf.mxu0
        %v700 = vadd.f32 0.0, %v699
        %v701 = vpop.f32.mrf.mxu0
        %702 = vmatprep.mubr.bf16.mxu0 %v389
        %703 = vmatmul.mubr.bf16.gmra.mxu0 %v388
        %v704 = vpop.f32.mrf.mxu0
        %v705 = vadd.f32 0.0, %v704
        %v706 = vpop.f32.mrf.mxu0
        %v707 = vpop.f32.mrf.mxu0
        %v708 = vadd.f32 0.0, %v707
        %v709 = vpop.f32.mrf.mxu0
        %710 = vmatprep.mubr.bf16.mxu0 %v391
        %711 = vmatmul.mubr.bf16.gmra.mxu0 %v390
        %v712 = vpop.f32.mrf.mxu0
        %v713 = vadd.f32 0.0, %v712
        %v714 = vpop.f32.mrf.mxu0
        %v715 = vpop.f32.mrf.mxu0
        %v716 = vadd.f32 0.0, %v715
        %v717 = vpop.f32.mrf.mxu0
        %718 = vmatprep.mubr.bf16.mxu0 %v393
        %719 = vmatmul.mubr.bf16.gmra.mxu0 %v392
        %v720 = vpop.f32.mrf.mxu0
        %v721 = vadd.f32 0.0, %v720
        %v722 = vpop.f32.mrf.mxu0
        %v723 = vpop.f32.mrf.mxu0
        %v724 = vadd.f32 0.0, %v723
        %v725 = vpop.f32.mrf.mxu0
        %726 = vmatprep.mubr.bf16.mxu0 %v395
        %727 = vmatmul.mubr.bf16.gmra.mxu0 %v394
        %v728 = vpop.f32.mrf.mxu0
        %v729 = vadd.f32 0.0, %v728
        %v730 = vpop.f32.mrf.mxu0
        %v731 = vpop.f32.mrf.mxu0
        %v732 = vadd.f32 0.0, %v731
        %v733 = vpop.f32.mrf.mxu0
        %734 = vmatprep.mubr.bf16.mxu0 %v397
        %735 = vmatmul.mubr.bf16.gmra.mxu0 %v396
        %v736 = vpop.f32.mrf.mxu0
        %v737 = vadd.f32 0.0, %v736
        %v738 = vpop.f32.mrf.mxu0
        %v739 = vpop.f32.mrf.mxu0
        %v740 = vadd.f32 0.0, %v739
        %v741 = vpop.f32.mrf.mxu0
        %742 = vmatprep.mubr.bf16.mxu0 %v399
        %743 = vmatmul.mubr.bf16.gmra.mxu0 %v398
        %v744 = vpop.f32.mrf.mxu0
        %v745 = vadd.f32 0.0, %v744
        %v746 = vpop.f32.mrf.mxu0
        %v747 = vpop.f32.mrf.mxu0
        %v748 = vadd.f32 0.0, %v747
        %v749 = vpop.f32.mrf.mxu0
        %750 = vmatprep.mubr.bf16.mxu0 %v401
        %751 = vmatmul.mubr.bf16.gmra.mxu0 %v400
        %v752 = vpop.f32.mrf.mxu0
        %v753 = vadd.f32 0.0, %v752
        %v754 = vpop.f32.mrf.mxu0
        %v755 = vpop.f32.mrf.mxu0
        %v756 = vadd.f32 0.0, %v755
        %v757 = vpop.f32.mrf.mxu0
        %758 = vmatprep.mubr.bf16.mxu0 %v403
        %759 = vmatmul.mubr.bf16.gmra.mxu0 %v402
        %v760 = vpop.f32.mrf.mxu0
        %v761 = vadd.f32 0.0, %v760
        %v762 = vpop.f32.mrf.mxu0
        %v763 = vpop.f32.mrf.mxu0
        %v764 = vadd.f32 0.0, %v763
        %v765 = vpop.f32.mrf.mxu0
        %766 = vmatprep.mubr.bf16.mxu0 %v405
        %767 = vmatmul.mubr.bf16.gmra.mxu0 %v404
        %v768 = vpop.f32.mrf.mxu0
        %v769 = vadd.f32 0.0, %v768
        %v770 = vpop.f32.mrf.mxu0
        %v771 = vpop.f32.mrf.mxu0
        %v772 = vadd.f32 0.0, %v771
        %v773 = vpop.f32.mrf.mxu0
        %774 = vmatprep.mubr.bf16.mxu0 %v407
        %775 = vmatmul.mubr.bf16.gmra.mxu0 %v406
        %v776 = vpop.f32.mrf.mxu0
        %v777 = vadd.f32 0.0, %v776
        %v778 = vpop.f32.mrf.mxu0
        %v779 = vpop.f32.mrf.mxu0
        %v780 = vadd.f32 0.0, %v779
        %v781 = vpop.f32.mrf.mxu0
        %782 = vmatprep.mubr.bf16.mxu0 %v409
        %783 = vmatmul.mubr.bf16.gmra.mxu0 %v408
        %v784 = vpop.f32.mrf.mxu0
        %v785 = vadd.f32 0.0, %v784
        %v786 = vpop.f32.mrf.mxu0
        %v787 = vpop.f32.mrf.mxu0
        %v788 = vadd.f32 0.0, %v787
        %v789 = vpop.f32.mrf.mxu0
        %790 = vmatprep.mubr.bf16.mxu0 %v411
        %791 = vmatmul.mubr.bf16.gmra.mxu0 %v410
        %v792 = vpop.f32.mrf.mxu0
        %v793 = vadd.f32 0.0, %v792
        %v794 = vpop.f32.mrf.mxu0
        %v795 = vpop.f32.mrf.mxu0
        %v796 = vadd.f32 0.0, %v795
        %v797 = vpop.f32.mrf.mxu0
        %798 = vmatprep.mubr.bf16.mxu0 %v413
        %799 = vmatmul.mubr.bf16.gmra.mxu0 %v412
        %v800 = vpop.f32.mrf.mxu0
        %v801 = vadd.f32 0.0, %v800
        %v802 = vpop.f32.mrf.mxu0
        %v803 = vpop.f32.mrf.mxu0
        %v804 = vadd.f32 0.0, %v803
        %v805 = vpop.f32.mrf.mxu0
        %806 = vmatprep.mubr.bf16.mxu0 %v415
        %807 = vmatmul.mubr.bf16.gmra.mxu0 %v414
        %v808 = vpop.f32.mrf.mxu0
        %v809 = vadd.f32 0.0, %v808
        %v810 = vpop.f32.mrf.mxu0
        %v811 = vpop.f32.mrf.mxu0
        %v812 = vadd.f32 0.0, %v811
        %v813 = vpop.f32.mrf.mxu0
        %814 = vmatprep.mubr.bf16.mxu0 %v417
        %815 = vmatmul.mubr.bf16.gmra.mxu0 %v416
        %v816 = vpop.f32.mrf.mxu0
        %v817 = vadd.f32 0.0, %v816
        %v818 = vpop.f32.mrf.mxu0
        %v819 = vpop.f32.mrf.mxu0
        %v820 = vadd.f32 0.0, %v819
        %v821 = vpop.f32.mrf.mxu0
        %822 = vmatprep.mubr.bf16.mxu0 %v419
        %823 = vmatmul.mubr.bf16.gmra.mxu0 %v418
        %v824 = vpop.f32.mrf.mxu0
        %v825 = vadd.f32 0.0, %v824
        %v826 = vpop.f32.mrf.mxu0
        %v827 = vpop.f32.mrf.mxu0
        %v828 = vadd.f32 0.0, %v827
        %v829 = vpop.f32.mrf.mxu0
        %830 = vmatprep.mubr.bf16.mxu0 %v421
        %831 = vmatmul.mubr.bf16.gmra.mxu0 %v420
        %v832 = vpop.f32.mrf.mxu0
        %v833 = vadd.f32 0.0, %v832
        %v834 = vpop.f32.mrf.mxu0
        %v835 = vpop.f32.mrf.mxu0
        %v836 = vadd.f32 0.0, %v835
        %v837 = vpop.f32.mrf.mxu0
        %838 = vdwg.mxu0
        %v839 = vld [vmem:[%s226] sm:$0xff]
        %v840 = vld [vmem:[%s226 + $0x8] sm:$0xff]
        %v841 = vld [vmem:[%s226 + $0x10] sm:$0xff]
        %v842 = vld [vmem:[%s226 + $0x18] sm:$0xff]
        %v843 = vld [vmem:[%s226 + $0x20] sm:$0xff]
        %v844 = vld [vmem:[%s226 + $0x28] sm:$0xff]
        %v845 = vld [vmem:[%s226 + $0x30] sm:$0xff]
        %v846 = vld [vmem:[%s226 + $0x38] sm:$0xff]
        %v847 = vld [vmem:[%s226 + $0x40] sm:$0xff]
        %v848 = vld [vmem:[%s226 + $0x48] sm:$0xff]
        %v849 = vld [vmem:[%s226 + $0x50] sm:$0xff]
        %v850 = vld [vmem:[%s226 + $0x58] sm:$0xff]
        %v851 = vld [vmem:[%s226 + $0x60] sm:$0xff]
        %v852 = vld [vmem:[%s226 + $0x68] sm:$0xff]
        %v853 = vld [vmem:[%s226 + $0x70] sm:$0xff]
        %v854 = vld [vmem:[%s226 + $0x78] sm:$0xff]
        %v855 = vld [vmem:[%s226 + $0x80] sm:$0xff]
        %v856 = vld [vmem:[%s226 + $0x88] sm:$0xff]
        %v857 = vld [vmem:[%s226 + $0x90] sm:$0xff]
        %v858 = vld [vmem:[%s226 + $0x98] sm:$0xff]
        %v859 = vld [vmem:[%s226 + $0xa0] sm:$0xff]
        %v860 = vld [vmem:[%s226 + $0xa8] sm:$0xff]
        %v861 = vld [vmem:[%s226 + $0xb0] sm:$0xff]
        %v862 = vld [vmem:[%s226 + $0xb8] sm:$0xff]
        %v863 = vld [vmem:[%s226 + $0xc0] sm:$0xff]
        %v864 = vld [vmem:[%s226 + $0xc8] sm:$0xff]
        %v865 = vld [vmem:[%s226 + $0xd0] sm:$0xff]
        %v866 = vld [vmem:[%s226 + $0xd8] sm:$0xff]
        %v867 = vld [vmem:[%s226 + $0xe0] sm:$0xff]
        %v868 = vld [vmem:[%s226 + $0xe8] sm:$0xff]
        %v869 = vld [vmem:[%s226 + $0xf0] sm:$0xff]
        %v870 = vld [vmem:[%s226 + $0xf8] sm:$0xff]
        %v871 = vld [vmem:[%s226 + $0x100] sm:$0xff]
        %v872 = vld [vmem:[%s226 + $0x108] sm:$0xff]
        %v873 = vld [vmem:[%s226 + $0x110] sm:$0xff]
        %v874 = vld [vmem:[%s226 + $0x118] sm:$0xff]
        %v875 = vld [vmem:[%s226 + $0x120] sm:$0xff]
        %v876 = vld [vmem:[%s226 + $0x128] sm:$0xff]
        %v877 = vld [vmem:[%s226 + $0x130] sm:$0xff]
        %v878 = vld [vmem:[%s226 + $0x138] sm:$0xff]
        %v879 = vld [vmem:[%s226 + $0x140] sm:$0xff]
        %v880 = vld [vmem:[%s226 + $0x148] sm:$0xff]
        %v881 = vld [vmem:[%s226 + $0x150] sm:$0xff]
        %v882 = vld [vmem:[%s226 + $0x158] sm:$0xff]
        %v883 = vld [vmem:[%s226 + $0x160] sm:$0xff]
        %v884 = vld [vmem:[%s226 + $0x168] sm:$0xff]
        %v885 = vld [vmem:[%s226 + $0x170] sm:$0xff]
        %v886 = vld [vmem:[%s226 + $0x178] sm:$0xff]
        %v887 = vld [vmem:[%s226 + $0x180] sm:$0xff]
        %v888 = vld [vmem:[%s226 + $0x188] sm:$0xff]
        %v889 = vld [vmem:[%s226 + $0x190] sm:$0xff]
        %v890 = vld [vmem:[%s226 + $0x198] sm:$0xff]
        %v891 = vld [vmem:[%s226 + $0x1a0] sm:$0xff]
        %v892 = vld [vmem:[%s226 + $0x1a8] sm:$0xff]
        %v893 = vld [vmem:[%s226 + $0x1b0] sm:$0xff]
        %v894 = vld [vmem:[%s226 + $0x1b8] sm:$0xff]
        %v895 = vld [vmem:[%s226 + $0x1c0] sm:$0xff]
        %v896 = vld [vmem:[%s226 + $0x1c8] sm:$0xff]
        %v897 = vld [vmem:[%s226 + $0x1d0] sm:$0xff]
        %v898 = vld [vmem:[%s226 + $0x1d8] sm:$0xff]
        %v899 = vld [vmem:[%s226 + $0x1e0] sm:$0xff]
        %v900 = vld [vmem:[%s226 + $0x1e8] sm:$0xff]
        %v901 = vld [vmem:[%s226 + $0x1f0] sm:$0xff]
        %v902 = vld [vmem:[%s226 + $0x1f8] sm:$0xff]
        %904 = vset.pattern.permute.xlu0 0
        %905 = vperm.xlu0 %904, %v839
        %v906 = vpop.permute.xlu0 %905
        %909 = vset.pattern.permute.xlu0 0
        %910 = vperm.xlu0 %909, %v840
        %v911 = vpop.permute.xlu0 %910
        %914 = vset.pattern.permute.xlu0 0
        %915 = vperm.xlu0 %914, %v841
        %v916 = vpop.permute.xlu0 %915
        %919 = vset.pattern.permute.xlu0 0
        %920 = vperm.xlu0 %919, %v842
        %v921 = vpop.permute.xlu0 %920
        %924 = vset.pattern.permute.xlu0 0
        %925 = vperm.xlu0 %924, %v843
        %v926 = vpop.permute.xlu0 %925
        %929 = vset.pattern.permute.xlu0 0
        %930 = vperm.xlu0 %929, %v844
        %v931 = vpop.permute.xlu0 %930
        %934 = vset.pattern.permute.xlu0 0
        %935 = vperm.xlu0 %934, %v845
        %v936 = vpop.permute.xlu0 %935
        %939 = vset.pattern.permute.xlu0 0
        %940 = vperm.xlu0 %939, %v846
        %v941 = vpop.permute.xlu0 %940
        %944 = vset.pattern.permute.xlu0 0
        %945 = vperm.xlu0 %944, %v847
        %v946 = vpop.permute.xlu0 %945
        %949 = vset.pattern.permute.xlu0 0
        %950 = vperm.xlu0 %949, %v848
        %v951 = vpop.permute.xlu0 %950
        %954 = vset.pattern.permute.xlu0 0
        %955 = vperm.xlu0 %954, %v849
        %v956 = vpop.permute.xlu0 %955
        %959 = vset.pattern.permute.xlu0 0
        %960 = vperm.xlu0 %959, %v850
        %v961 = vpop.permute.xlu0 %960
        %964 = vset.pattern.permute.xlu0 0
        %965 = vperm.xlu0 %964, %v851
        %v966 = vpop.permute.xlu0 %965
        %969 = vset.pattern.permute.xlu0 0
        %970 = vperm.xlu0 %969, %v852
        %v971 = vpop.permute.xlu0 %970
        %974 = vset.pattern.permute.xlu0 0
        %975 = vperm.xlu0 %974, %v853
        %v976 = vpop.permute.xlu0 %975
        %979 = vset.pattern.permute.xlu0 0
        %980 = vperm.xlu0 %979, %v854
        %v981 = vpop.permute.xlu0 %980
        %984 = vset.pattern.permute.xlu0 0
        %985 = vperm.xlu0 %984, %v855
        %v986 = vpop.permute.xlu0 %985
        %989 = vset.pattern.permute.xlu0 0
        %990 = vperm.xlu0 %989, %v856
        %v991 = vpop.permute.xlu0 %990
        %994 = vset.pattern.permute.xlu0 0
        %995 = vperm.xlu0 %994, %v857
        %v996 = vpop.permute.xlu0 %995
        %999 = vset.pattern.permute.xlu0 0
        %1000 = vperm.xlu0 %999, %v858
        %v1001 = vpop.permute.xlu0 %1000
        %1004 = vset.pattern.permute.xlu0 0
        %1005 = vperm.xlu0 %1004, %v859
        %v1006 = vpop.permute.xlu0 %1005
        %1009 = vset.pattern.permute.xlu0 0
        %1010 = vperm.xlu0 %1009, %v860
        %v1011 = vpop.permute.xlu0 %1010
        %1014 = vset.pattern.permute.xlu0 0
        %1015 = vperm.xlu0 %1014, %v861
        %v1016 = vpop.permute.xlu0 %1015
        %1019 = vset.pattern.permute.xlu0 0
        %1020 = vperm.xlu0 %1019, %v862
        %v1021 = vpop.permute.xlu0 %1020
        %1024 = vset.pattern.permute.xlu0 0
        %1025 = vperm.xlu0 %1024, %v863
        %v1026 = vpop.permute.xlu0 %1025
        %1029 = vset.pattern.permute.xlu0 0
        %1030 = vperm.xlu0 %1029, %v864
        %v1031 = vpop.permute.xlu0 %1030
        %1034 = vset.pattern.permute.xlu0 0
        %1035 = vperm.xlu0 %1034, %v865
        %v1036 = vpop.permute.xlu0 %1035
        %1039 = vset.pattern.permute.xlu0 0
        %1040 = vperm.xlu0 %1039, %v866
        %v1041 = vpop.permute.xlu0 %1040
        %1044 = vset.pattern.permute.xlu0 0
        %1045 = vperm.xlu0 %1044, %v867
        %v1046 = vpop.permute.xlu0 %1045
        %1049 = vset.pattern.permute.xlu0 0
        %1050 = vperm.xlu0 %1049, %v868
        %v1051 = vpop.permute.xlu0 %1050
        %1054 = vset.pattern.permute.xlu0 0
        %1055 = vperm.xlu0 %1054, %v869
        %v1056 = vpop.permute.xlu0 %1055
        %1059 = vset.pattern.permute.xlu0 0
        %1060 = vperm.xlu0 %1059, %v870
        %v1061 = vpop.permute.xlu0 %1060
        %1064 = vset.pattern.permute.xlu0 0
        %1065 = vperm.xlu0 %1064, %v871
        %v1066 = vpop.permute.xlu0 %1065
        %1069 = vset.pattern.permute.xlu0 0
        %1070 = vperm.xlu0 %1069, %v872
        %v1071 = vpop.permute.xlu0 %1070
        %1074 = vset.pattern.permute.xlu0 0
        %1075 = vperm.xlu0 %1074, %v873
        %v1076 = vpop.permute.xlu0 %1075
        %1079 = vset.pattern.permute.xlu0 0
        %1080 = vperm.xlu0 %1079, %v874
        %v1081 = vpop.permute.xlu0 %1080
        %1084 = vset.pattern.permute.xlu0 0
        %1085 = vperm.xlu0 %1084, %v875
        %v1086 = vpop.permute.xlu0 %1085
        %1089 = vset.pattern.permute.xlu0 0
        %1090 = vperm.xlu0 %1089, %v876
        %v1091 = vpop.permute.xlu0 %1090
        %1094 = vset.pattern.permute.xlu0 0
        %1095 = vperm.xlu0 %1094, %v877
        %v1096 = vpop.permute.xlu0 %1095
        %1099 = vset.pattern.permute.xlu0 0
        %1100 = vperm.xlu0 %1099, %v878
        %v1101 = vpop.permute.xlu0 %1100
        %1104 = vset.pattern.permute.xlu0 0
        %1105 = vperm.xlu0 %1104, %v879
        %v1106 = vpop.permute.xlu0 %1105
        %1109 = vset.pattern.permute.xlu0 0
        %1110 = vperm.xlu0 %1109, %v880
        %v1111 = vpop.permute.xlu0 %1110
        %1114 = vset.pattern.permute.xlu0 0
        %1115 = vperm.xlu0 %1114, %v881
        %v1116 = vpop.permute.xlu0 %1115
        %1119 = vset.pattern.permute.xlu0 0
        %1120 = vperm.xlu0 %1119, %v882
        %v1121 = vpop.permute.xlu0 %1120
        %1124 = vset.pattern.permute.xlu0 0
        %1125 = vperm.xlu0 %1124, %v883
        %v1126 = vpop.permute.xlu0 %1125
        %1129 = vset.pattern.permute.xlu0 0
        %1130 = vperm.xlu0 %1129, %v884
        %v1131 = vpop.permute.xlu0 %1130
        %1134 = vset.pattern.permute.xlu0 0
        %1135 = vperm.xlu0 %1134, %v885
        %v1136 = vpop.permute.xlu0 %1135
        %1139 = vset.pattern.permute.xlu0 0
        %1140 = vperm.xlu0 %1139, %v886
        %v1141 = vpop.permute.xlu0 %1140
        %1144 = vset.pattern.permute.xlu0 0
        %1145 = vperm.xlu0 %1144, %v887
        %v1146 = vpop.permute.xlu0 %1145
        %1149 = vset.pattern.permute.xlu0 0
        %1150 = vperm.xlu0 %1149, %v888
        %v1151 = vpop.permute.xlu0 %1150
        %1154 = vset.pattern.permute.xlu0 0
        %1155 = vperm.xlu0 %1154, %v889
        %v1156 = vpop.permute.xlu0 %1155
        %1159 = vset.pattern.permute.xlu0 0
        %1160 = vperm.xlu0 %1159, %v890
        %v1161 = vpop.permute.xlu0 %1160
        %1164 = vset.pattern.permute.xlu0 0
        %1165 = vperm.xlu0 %1164, %v891
        %v1166 = vpop.permute.xlu0 %1165
        %1169 = vset.pattern.permute.xlu0 0
        %1170 = vperm.xlu0 %1169, %v892
        %v1171 = vpop.permute.xlu0 %1170
        %1174 = vset.pattern.permute.xlu0 0
        %1175 = vperm.xlu0 %1174, %v893
        %v1176 = vpop.permute.xlu0 %1175
        %1179 = vset.pattern.permute.xlu0 0
        %1180 = vperm.xlu0 %1179, %v894
        %v1181 = vpop.permute.xlu0 %1180
        %1184 = vset.pattern.permute.xlu0 0
        %1185 = vperm.xlu0 %1184, %v895
        %v1186 = vpop.permute.xlu0 %1185
        %1189 = vset.pattern.permute.xlu0 0
        %1190 = vperm.xlu0 %1189, %v896
        %v1191 = vpop.permute.xlu0 %1190
        %1194 = vset.pattern.permute.xlu0 0
        %1195 = vperm.xlu0 %1194, %v897
        %v1196 = vpop.permute.xlu0 %1195
        %1199 = vset.pattern.permute.xlu0 0
        %1200 = vperm.xlu0 %1199, %v898
        %v1201 = vpop.permute.xlu0 %1200
        %1204 = vset.pattern.permute.xlu0 0
        %1205 = vperm.xlu0 %1204, %v899
        %v1206 = vpop.permute.xlu0 %1205
        %1209 = vset.pattern.permute.xlu0 0
        %1210 = vperm.xlu0 %1209, %v900
        %v1211 = vpop.permute.xlu0 %1210
        %1214 = vset.pattern.permute.xlu0 0
        %1215 = vperm.xlu0 %1214, %v901
        %v1216 = vpop.permute.xlu0 %1215
        %1219 = vset.pattern.permute.xlu0 0
        %1220 = vperm.xlu0 %1219, %v902
        %v1221 = vpop.permute.xlu0 %1220
        %v1223 = vmul.f32 %v585, %v906
        %v1224 = vmul.f32 %v588, %v911
        %v1225 = vmul.f32 %v593, %v916
        %v1226 = vmul.f32 %v596, %v921
        %v1227 = vmul.f32 %v601, %v926
        %v1228 = vmul.f32 %v604, %v931
        %v1229 = vmul.f32 %v609, %v936
        %v1230 = vmul.f32 %v612, %v941
        %v1231 = vmul.f32 %v617, %v946
        %v1232 = vmul.f32 %v620, %v951
        %v1233 = vmul.f32 %v625, %v956
        %v1234 = vmul.f32 %v628, %v961
        %v1235 = vmul.f32 %v633, %v966
        %v1236 = vmul.f32 %v636, %v971
        %v1237 = vmul.f32 %v641, %v976
        %v1238 = vmul.f32 %v644, %v981
        %v1239 = vmul.f32 %v649, %v986
        %v1240 = vmul.f32 %v652, %v991
        %v1241 = vmul.f32 %v657, %v996
        %v1242 = vmul.f32 %v660, %v1001
        %v1243 = vmul.f32 %v665, %v1006
        %v1244 = vmul.f32 %v668, %v1011
        %v1245 = vmul.f32 %v673, %v1016
        %v1246 = vmul.f32 %v676, %v1021
        %v1247 = vmul.f32 %v681, %v1026
        %v1248 = vmul.f32 %v684, %v1031
        %v1249 = vmul.f32 %v689, %v1036
        %v1250 = vmul.f32 %v692, %v1041
        %v1251 = vmul.f32 %v697, %v1046
        %v1252 = vmul.f32 %v700, %v1051
        %v1253 = vmul.f32 %v705, %v1056
        %v1254 = vmul.f32 %v708, %v1061
        %v1255 = vmul.f32 %v713, %v1066
        %v1256 = vmul.f32 %v716, %v1071
        %v1257 = vmul.f32 %v721, %v1076
        %v1258 = vmul.f32 %v724, %v1081
        %v1259 = vmul.f32 %v729, %v1086
        %v1260 = vmul.f32 %v732, %v1091
        %v1261 = vmul.f32 %v737, %v1096
        %v1262 = vmul.f32 %v740, %v1101
        %v1263 = vmul.f32 %v745, %v1106
        %v1264 = vmul.f32 %v748, %v1111
        %v1265 = vmul.f32 %v753, %v1116
        %v1266 = vmul.f32 %v756, %v1121
        %v1267 = vmul.f32 %v761, %v1126
        %v1268 = vmul.f32 %v764, %v1131
        %v1269 = vmul.f32 %v769, %v1136
        %v1270 = vmul.f32 %v772, %v1141
        %v1271 = vmul.f32 %v777, %v1146
        %v1272 = vmul.f32 %v780, %v1151
        %v1273 = vmul.f32 %v785, %v1156
        %v1274 = vmul.f32 %v788, %v1161
        %v1275 = vmul.f32 %v793, %v1166
        %v1276 = vmul.f32 %v796, %v1171
        %v1277 = vmul.f32 %v801, %v1176
        %v1278 = vmul.f32 %v804, %v1181
        %v1279 = vmul.f32 %v809, %v1186
        %v1280 = vmul.f32 %v812, %v1191
        %v1281 = vmul.f32 %v817, %v1196
        %v1282 = vmul.f32 %v820, %v1201
        %v1283 = vmul.f32 %v825, %v1206
        %v1284 = vmul.f32 %v828, %v1211
        %v1285 = vmul.f32 %v833, %v1216
        %v1286 = vmul.f32 %v836, %v1221
        %v1287 = vpack.c.bf16 %v1224, %v1223
        %v1288 = vpack.c.bf16 %v1226, %v1225
        %v1289 = vpack.c.bf16 %v1228, %v1227
        %v1290 = vpack.c.bf16 %v1230, %v1229
        %v1291 = vpack.c.bf16 %v1232, %v1231
        %v1292 = vpack.c.bf16 %v1234, %v1233
        %v1293 = vpack.c.bf16 %v1236, %v1235
        %v1294 = vpack.c.bf16 %v1238, %v1237
        %v1295 = vpack.c.bf16 %v1240, %v1239
        %v1296 = vpack.c.bf16 %v1242, %v1241
        %v1297 = vpack.c.bf16 %v1244, %v1243
        %v1298 = vpack.c.bf16 %v1246, %v1245
        %v1299 = vpack.c.bf16 %v1248, %v1247
        %v1300 = vpack.c.bf16 %v1250, %v1249
        %v1301 = vpack.c.bf16 %v1252, %v1251
        %v1302 = vpack.c.bf16 %v1254, %v1253
        %v1303 = vpack.c.bf16 %v1256, %v1255
        %v1304 = vpack.c.bf16 %v1258, %v1257
        %v1305 = vpack.c.bf16 %v1260, %v1259
        %v1306 = vpack.c.bf16 %v1262, %v1261
        %v1307 = vpack.c.bf16 %v1264, %v1263
        %v1308 = vpack.c.bf16 %v1266, %v1265
        %v1309 = vpack.c.bf16 %v1268, %v1267
        %v1310 = vpack.c.bf16 %v1270, %v1269
        %v1311 = vpack.c.bf16 %v1272, %v1271
        %v1312 = vpack.c.bf16 %v1274, %v1273
        %v1313 = vpack.c.bf16 %v1276, %v1275
        %v1314 = vpack.c.bf16 %v1278, %v1277
        %v1315 = vpack.c.bf16 %v1280, %v1279
        %v1316 = vpack.c.bf16 %v1282, %v1281
        %v1317 = vpack.c.bf16 %v1284, %v1283
        %v1318 = vpack.c.bf16 %v1286, %v1285
        %v1351 = vunpack.c.l.b16 %v1287
        %v1352 = vunpack.c.h.b16 %v1287
        %v1353 = vunpack.c.l.b16 %v1288
        %v1354 = vunpack.c.h.b16 %v1288
        %v1355 = vunpack.c.l.b16 %v1289
        %v1356 = vunpack.c.h.b16 %v1289
        %v1357 = vunpack.c.l.b16 %v1290
        %v1358 = vunpack.c.h.b16 %v1290
        %v1359 = vunpack.c.l.b16 %v1291
        %v1360 = vunpack.c.h.b16 %v1291
        %v1361 = vunpack.c.l.b16 %v1292
        %v1362 = vunpack.c.h.b16 %v1292
        %v1363 = vunpack.c.l.b16 %v1293
        %v1364 = vunpack.c.h.b16 %v1293
        %v1365 = vunpack.c.l.b16 %v1294
        %v1366 = vunpack.c.h.b16 %v1294
        %v1367 = vunpack.c.l.b16 %v1295
        %v1368 = vunpack.c.h.b16 %v1295
        %v1369 = vunpack.c.l.b16 %v1296
        %v1370 = vunpack.c.h.b16 %v1296
        %v1371 = vunpack.c.l.b16 %v1297
        %v1372 = vunpack.c.h.b16 %v1297
        %v1373 = vunpack.c.l.b16 %v1298
        %v1374 = vunpack.c.h.b16 %v1298
        %v1375 = vunpack.c.l.b16 %v1299
        %v1376 = vunpack.c.h.b16 %v1299
        %v1377 = vunpack.c.l.b16 %v1300
        %v1378 = vunpack.c.h.b16 %v1300
        %v1379 = vunpack.c.l.b16 %v1301
        %v1380 = vunpack.c.h.b16 %v1301
        %v1381 = vunpack.c.l.b16 %v1302
        %v1382 = vunpack.c.h.b16 %v1302
        %v1383 = vunpack.c.l.b16 %v1303
        %v1384 = vunpack.c.h.b16 %v1303
        %v1385 = vunpack.c.l.b16 %v1304
        %v1386 = vunpack.c.h.b16 %v1304
        %v1387 = vunpack.c.l.b16 %v1305
        %v1388 = vunpack.c.h.b16 %v1305
        %v1389 = vunpack.c.l.b16 %v1306
        %v1390 = vunpack.c.h.b16 %v1306
        %v1391 = vunpack.c.l.b16 %v1307
        %v1392 = vunpack.c.h.b16 %v1307
        %v1393 = vunpack.c.l.b16 %v1308
        %v1394 = vunpack.c.h.b16 %v1308
        %v1395 = vunpack.c.l.b16 %v1309
        %v1396 = vunpack.c.h.b16 %v1309
        %v1397 = vunpack.c.l.b16 %v1310
        %v1398 = vunpack.c.h.b16 %v1310
        %v1399 = vunpack.c.l.b16 %v1311
        %v1400 = vunpack.c.h.b16 %v1311
        %v1401 = vunpack.c.l.b16 %v1312
        %v1402 = vunpack.c.h.b16 %v1312
        %v1403 = vunpack.c.l.b16 %v1313
        %v1404 = vunpack.c.h.b16 %v1313
        %v1405 = vunpack.c.l.b16 %v1314
        %v1406 = vunpack.c.h.b16 %v1314
        %v1407 = vunpack.c.l.b16 %v1315
        %v1408 = vunpack.c.h.b16 %v1315
        %v1409 = vunpack.c.l.b16 %v1316
        %v1410 = vunpack.c.h.b16 %v1316
        %v1411 = vunpack.c.l.b16 %v1317
        %v1412 = vunpack.c.h.b16 %v1317
        %v1413 = vunpack.c.l.b16 %v1318
        %v1414 = vunpack.c.h.b16 %v1318
        %v1415 = vpack.c.b16 %v1351, %v1351
        %v1416 = vpack.c.b16 %v1352, %v1352
        %v1417 = vpack.c.b16 %v1353, %v1353
        %v1418 = vpack.c.b16 %v1354, %v1354
        %v1419 = vpack.c.b16 %v1355, %v1355
        %v1420 = vpack.c.b16 %v1356, %v1356
        %v1421 = vpack.c.b16 %v1357, %v1357
        %v1422 = vpack.c.b16 %v1358, %v1358
        %v1423 = vpack.c.b16 %v1359, %v1359
        %v1424 = vpack.c.b16 %v1360, %v1360
        %v1425 = vpack.c.b16 %v1361, %v1361
        %v1426 = vpack.c.b16 %v1362, %v1362
        %v1427 = vpack.c.b16 %v1363, %v1363
        %v1428 = vpack.c.b16 %v1364, %v1364
        %v1429 = vpack.c.b16 %v1365, %v1365
        %v1430 = vpack.c.b16 %v1366, %v1366
        %v1431 = vpack.c.b16 %v1367, %v1367
        %v1432 = vpack.c.b16 %v1368, %v1368
        %v1433 = vpack.c.b16 %v1369, %v1369
        %v1434 = vpack.c.b16 %v1370, %v1370
        %v1435 = vpack.c.b16 %v1371, %v1371
        %v1436 = vpack.c.b16 %v1372, %v1372
        %v1437 = vpack.c.b16 %v1373, %v1373
        %v1438 = vpack.c.b16 %v1374, %v1374
        %v1439 = vpack.c.b16 %v1375, %v1375
        %v1440 = vpack.c.b16 %v1376, %v1376
        %v1441 = vpack.c.b16 %v1377, %v1377
        %v1442 = vpack.c.b16 %v1378, %v1378
        %v1443 = vpack.c.b16 %v1379, %v1379
        %v1444 = vpack.c.b16 %v1380, %v1380
        %v1445 = vpack.c.b16 %v1381, %v1381
        %v1446 = vpack.c.b16 %v1382, %v1382
        %v1447 = vpack.c.b16 %v1383, %v1383
        %v1448 = vpack.c.b16 %v1384, %v1384
        %v1449 = vpack.c.b16 %v1385, %v1385
        %v1450 = vpack.c.b16 %v1386, %v1386
        %v1451 = vpack.c.b16 %v1387, %v1387
        %v1452 = vpack.c.b16 %v1388, %v1388
        %v1453 = vpack.c.b16 %v1389, %v1389
        %v1454 = vpack.c.b16 %v1390, %v1390
        %v1455 = vpack.c.b16 %v1391, %v1391
        %v1456 = vpack.c.b16 %v1392, %v1392
        %v1457 = vpack.c.b16 %v1393, %v1393
        %v1458 = vpack.c.b16 %v1394, %v1394
        %v1459 = vpack.c.b16 %v1395, %v1395
        %v1460 = vpack.c.b16 %v1396, %v1396
        %v1461 = vpack.c.b16 %v1397, %v1397
        %v1462 = vpack.c.b16 %v1398, %v1398
        %v1463 = vpack.c.b16 %v1399, %v1399
        %v1464 = vpack.c.b16 %v1400, %v1400
        %v1465 = vpack.c.b16 %v1401, %v1401
        %v1466 = vpack.c.b16 %v1402, %v1402
        %v1467 = vpack.c.b16 %v1403, %v1403
        %v1468 = vpack.c.b16 %v1404, %v1404
        %v1469 = vpack.c.b16 %v1405, %v1405
        %v1470 = vpack.c.b16 %v1406, %v1406
        %v1471 = vpack.c.b16 %v1407, %v1407
        %v1472 = vpack.c.b16 %v1408, %v1408
        %v1473 = vpack.c.b16 %v1409, %v1409
        %v1474 = vpack.c.b16 %v1410, %v1410
        %v1475 = vpack.c.b16 %v1411, %v1411
        %v1476 = vpack.c.b16 %v1412, %v1412
        %v1477 = vpack.c.b16 %v1413, %v1413
        %v1478 = vpack.c.b16 %v1414, %v1414
        %1543 = vst [vmem:[%s220] sm:$0xf] %v1415
        %1544 = vst [vmem:[%s220 + $0x4] sm:$0xf] %v1416
        %1545 = vst [vmem:[%s220 + $0x8] sm:$0xf] %v1417
        %1546 = vst [vmem:[%s220 + $0xc] sm:$0xf] %v1418
        %1547 = vst [vmem:[%s220 + $0x10] sm:$0xf] %v1419
        %1548 = vst [vmem:[%s220 + $0x14] sm:$0xf] %v1420
        %1549 = vst [vmem:[%s220 + $0x18] sm:$0xf] %v1421
        %1550 = vst [vmem:[%s220 + $0x1c] sm:$0xf] %v1422
        %1551 = vst [vmem:[%s220 + $0x20] sm:$0xf] %v1423
        %1552 = vst [vmem:[%s220 + $0x24] sm:$0xf] %v1424
        %1553 = vst [vmem:[%s220 + $0x28] sm:$0xf] %v1425
        %1554 = vst [vmem:[%s220 + $0x2c] sm:$0xf] %v1426
        %1555 = vst [vmem:[%s220 + $0x30] sm:$0xf] %v1427
        %1556 = vst [vmem:[%s220 + $0x34] sm:$0xf] %v1428
        %1557 = vst [vmem:[%s220 + $0x38] sm:$0xf] %v1429
        %1558 = vst [vmem:[%s220 + $0x3c] sm:$0xf] %v1430
        %1559 = vst [vmem:[%s220 + $0x40] sm:$0xf] %v1431
        %1560 = vst [vmem:[%s220 + $0x44] sm:$0xf] %v1432
        %1561 = vst [vmem:[%s220 + $0x48] sm:$0xf] %v1433
        %1562 = vst [vmem:[%s220 + $0x4c] sm:$0xf] %v1434
        %1563 = vst [vmem:[%s220 + $0x50] sm:$0xf] %v1435
        %1564 = vst [vmem:[%s220 + $0x54] sm:$0xf] %v1436
        %1565 = vst [vmem:[%s220 + $0x58] sm:$0xf] %v1437
        %1566 = vst [vmem:[%s220 + $0x5c] sm:$0xf] %v1438
        %1567 = vst [vmem:[%s220 + $0x60] sm:$0xf] %v1439
        %1568 = vst [vmem:[%s220 + $0x64] sm:$0xf] %v1440
        %1569 = vst [vmem:[%s220 + $0x68] sm:$0xf] %v1441
        %1570 = vst [vmem:[%s220 + $0x6c] sm:$0xf] %v1442
        %1571 = vst [vmem:[%s220 + $0x70] sm:$0xf] %v1443
        %1572 = vst [vmem:[%s220 + $0x74] sm:$0xf] %v1444
        %1573 = vst [vmem:[%s220 + $0x78] sm:$0xf] %v1445
        %1574 = vst [vmem:[%s220 + $0x7c] sm:$0xf] %v1446
        %1575 = vst [vmem:[%s220 + $0x80] sm:$0xf] %v1447
        %1576 = vst [vmem:[%s220 + $0x84] sm:$0xf] %v1448
        %1577 = vst [vmem:[%s220 + $0x88] sm:$0xf] %v1449
        %1578 = vst [vmem:[%s220 + $0x8c] sm:$0xf] %v1450
        %1579 = vst [vmem:[%s220 + $0x90] sm:$0xf] %v1451
        %1580 = vst [vmem:[%s220 + $0x94] sm:$0xf] %v1452
        %1581 = vst [vmem:[%s220 + $0x98] sm:$0xf] %v1453
        %1582 = vst [vmem:[%s220 + $0x9c] sm:$0xf] %v1454
        %1583 = vst [vmem:[%s220 + $0xa0] sm:$0xf] %v1455
        %1584 = vst [vmem:[%s220 + $0xa4] sm:$0xf] %v1456
        %1585 = vst [vmem:[%s220 + $0xa8] sm:$0xf] %v1457
        %1586 = vst [vmem:[%s220 + $0xac] sm:$0xf] %v1458
        %1587 = vst [vmem:[%s220 + $0xb0] sm:$0xf] %v1459
        %1588 = vst [vmem:[%s220 + $0xb4] sm:$0xf] %v1460
        %1589 = vst [vmem:[%s220 + $0xb8] sm:$0xf] %v1461
        %1590 = vst [vmem:[%s220 + $0xbc] sm:$0xf] %v1462
        %1591 = vst [vmem:[%s220 + $0xc0] sm:$0xf] %v1463
        %1592 = vst [vmem:[%s220 + $0xc4] sm:$0xf] %v1464
        %1593 = vst [vmem:[%s220 + $0xc8] sm:$0xf] %v1465
        %1594 = vst [vmem:[%s220 + $0xcc] sm:$0xf] %v1466
        %1595 = vst [vmem:[%s220 + $0xd0] sm:$0xf] %v1467
        %1596 = vst [vmem:[%s220 + $0xd4] sm:$0xf] %v1468
        %1597 = vst [vmem:[%s220 + $0xd8] sm:$0xf] %v1469
        %1598 = vst [vmem:[%s220 + $0xdc] sm:$0xf] %v1470
        %1599 = vst [vmem:[%s220 + $0xe0] sm:$0xf] %v1471
        %1600 = vst [vmem:[%s220 + $0xe4] sm:$0xf] %v1472
        %1601 = vst [vmem:[%s220 + $0xe8] sm:$0xf] %v1473
        %1602 = vst [vmem:[%s220 + $0xec] sm:$0xf] %v1474
        %1603 = vst [vmem:[%s220 + $0xf0] sm:$0xf] %v1475
        %1604 = vst [vmem:[%s220 + $0xf4] sm:$0xf] %v1476
        %1605 = vst [vmem:[%s220 + $0xf8] sm:$0xf] %v1477
        %1606 = vst [vmem:[%s220 + $0xfc] sm:$0xf] %v1478
        %s1607 = sand.u32 %s102, 1
        %s1608 = scalar_lea.sflag [#allocation4], %s1607
        %s1609 = sand.u32 %s102, 1
        %s1610 = smul.addr %s1609, 256
        %s1611 = scalar_lea.vmem [#allocation7], %s1610
        // Predicated region
        $region41: #{tpu_custom_call.1} parent=31 // pred_check
          %p1612 = pneg %p112
        $region42: #{tpu_custom_call.1} parent=31 // pred_check_branch
          %1614 = sbr.rel (%p1612) target = $region44
        $region43: #{tpu_custom_call.1} parent=31 // pred_region
          %s1615 = smul.u32 64, %s21
          %s1617 = ssub.s32 4096, 4096
          %1618 = vsyncadd %s1608, %s1617
          %s1619 = smul.addr %s1615, 64
          %s1620 = scalar_lea.hbm %s3, %s1619
          %s1621 = sshll.u32 %s1611, 4
          %s1622 = int_to_ptr.vmem [resolvable:$true] %s1621
          %1627 = dma.vmem_to_hbm [thread:$0]  %s1622, 4096, %s1620, %s1608, 64, 64, 4
        $region44: #{tpu_custom_call.1} parent=31 // pred_fallthru
          _
      $region32: #{tpu_custom_call.1} parent=5 // pred_fallthru
        _
      %p1628 = scmp.le.s32.totalorder 2, %s16
      // Predicated region
      $region45: #{tpu_custom_call.1} parent=5 // pred_check
        %p1629 = pneg %p1628
      $region46: #{tpu_custom_call.1} parent=5 // pred_check_branch
        %1631 = sbr.rel (%p1629) target = $region48
      $region47: #{tpu_custom_call.1} parent=5 // pred_region
        %s1632 = ssub.s32 %s16, 2
        // Predicated region
        $region49: #{tpu_custom_call.1} parent=47 // pred_check
          %p1633 = pneg %p118
        $region50: #{tpu_custom_call.1} parent=47 // pred_check_branch
          %1635 = sbr.rel (%p1633) target = $region52
        $region51: #{tpu_custom_call.1} parent=47 // pred_region
          %s1636 = sand.u32 %s103, 1
          %s1637 = scalar_lea.sflag [#allocation4], %s1636
          %s1638 = sand.u32 %s103, 1
          %s1639 = smul.addr %s1638, 256
          %s1640 = scalar_lea.vmem [#allocation7], %s1639
          %1641 = dma.done %s1637, 4096
        $region52: #{tpu_custom_call.1} parent=47 // pred_fallthru
          _
      $region48: #{tpu_custom_call.1} parent=5 // pred_fallthru
        _
    $region6: #{tpu_custom_call.1} parent=1 // loop_footer
      %s20 = sadd.s32 1, %s16
    $region7: #{tpu_custom_call.1} parent=1 // loop_footer_branch
      %15 = sbr.rel target = $region3
    $region8: #{tpu_custom_call.1} parent=1 // loop_exit
      _
    %1642 = vsyncpa [#allocation3], 1
    %s1643 = scalar_lea.sflag [#allocation3], 1
    %1644 = vsyncpa %s1643, 1
    %1645 = vsyncpa [#allocation6], 1
    %1646 = vsyncpa [#allocation4], 1
    %s1647 = scalar_lea.sflag [#allocation4], 1
    %1648 = vsyncpa %s1647, 1

</llo_original>
